<compile_context>
chip_gen: v7x
topology: tpu7x:2x2x1
jax: 0.10.0
libtpu: 0.0.40
codegen_flags: <defaults>
</compile_context>

<pallas_src>
import jax
import jax.numpy as jnp
from jax import lax
from jax.experimental import pallas as pl
from jax.experimental.pallas import tpu as pltpu

VOXEL_SIZE = 0.2
_VMEM_LIMIT = 48 * 1024 * 1024


def _largest_aligned_divisor(n, target, align):
    """Largest divisor of n that is <= target and a multiple of `align`.
    Falls back to n (full axis == always a legal block dim)."""
    if n <= target:
        return n
    t = (target // align) * align
    while t >= align:
        if n % t == 0:
            return t
        t -= align
    return n


# ---------------------------------------------------------------------------
# Kernel 1 (fused): depth back-projection + SpatialAwareModule (approx)
#   xyz   = (pose @ K^-1)[:3] @ [u*d, v*d, d, 1]           (VPU, per point)
#   out   = features + MLP(xyz) position embedding          (VPU + one MXU GEMM)
# Emits: video_features f32, video_features bf16 (for pooling), xyz f32.
# ---------------------------------------------------------------------------
def spatial_aware_fused(M, feat_flat, depth_flat, w1, b1, w2_bf16, b2,
                        *, img_w, hw, target_rows=1024):
    """M: (BV, 12) f32 rows of (pose @ inv(K))[:3, :4], SMEM resident.
    feat_flat/depth_flat: (N, C) / (N, 1) point-major, N = BV * hw."""
    N, C = feat_flat.shape
    BV = M.shape[0]
    HD = w1.shape[1]
    tile = _largest_aligned_divisor(hw, target_rows, 8)   # rows per grid step
    n_t = hw // tile

    def kernel(m_ref, feat_ref, depth_ref, w1_ref, b1_ref, w2_ref, b2_ref,
               out_ref, out16_ref, xyz_ref):
        bv = pl.program_id(0)
        t = pl.program_id(1)
        d = depth_ref[...]                                      # (tile, 1) f32

        # Per-point pixel coordinates from the flat in-view index (float math
        # avoids vector integer div/mod; exact for any realistic H*W).
        idx = t * tile + lax.broadcasted_iota(jnp.int32, (tile, 1), 0)
        idx_f = idx.astype(jnp.float32)
        v = jnp.floor((idx_f + 0.5) * (1.0 / img_w))            # row
        u = idx_f - v * img_w                                   # col
        ud = u * d
        vd = v * d

        # xyz = M[:3, :4] @ [u*d, v*d, d, 1]  (scalar coefficients from SMEM)
        x = m_ref[bv, 0] * ud + m_ref[bv, 1] * vd + m_ref[bv, 2] * d + m_ref[bv, 3]
        y = m_ref[bv, 4] * ud + m_ref[bv, 5] * vd + m_ref[bv, 6] * d + m_ref[bv, 7]
        z = m_ref[bv, 8] * ud + m_ref[bv, 9] * vd + m_ref[bv, 10] * d + m_ref[bv, 11]
        xyz_ref[:, 0:1] = x
        xyz_ref[:, 1:2] = y
        xyz_ref[:, 2:3] = z

        # Position-embedding MLP. First layer (K=3) on the VPU instead of a
        # mostly-zero MXU contraction; second layer on the MXU in bf16.
        h = x * w1_ref[0:1, :] + y * w1_ref[1:2, :] + z * w1_ref[2:3, :] + b1_ref[...]
        h = jnp.maximum(h, 0.0)
        pe = jnp.dot(h.astype(jnp.bfloat16), w2_ref[...],
                     preferred_element_type=jnp.float32) + b2_ref[...]
        vf = feat_ref[...] + pe
        out_ref[...] = vf
        out16_ref[...] = vf.astype(jnp.bfloat16)

    return pl.pallas_call(
        kernel,
        out_shape=(jax.ShapeDtypeStruct((N, C), jnp.float32),
                   jax.ShapeDtypeStruct((N, C), jnp.bfloat16),
                   jax.ShapeDtypeStruct((N, 3), jnp.float32)),
        grid=(BV, n_t),
        in_specs=[
            pl.BlockSpec(memory_space=pltpu.MemorySpace.SMEM),          # M table
            pl.BlockSpec((tile, C), lambda bv, t: (bv * n_t + t, 0)),   # features
            pl.BlockSpec((tile, 1), lambda bv, t: (bv * n_t + t, 0)),   # depth
            pl.BlockSpec((3, HD), lambda bv, t: (0, 0)),                # w1
            pl.BlockSpec((1, HD), lambda bv, t: (0, 0)),                # b1
            pl.BlockSpec((HD, C), lambda bv, t: (0, 0)),                # w2 (bf16)
            pl.BlockSpec((1, C), lambda bv, t: (0, 0)),                 # b2
        ],
        out_specs=(
            pl.BlockSpec((tile, C), lambda bv, t: (bv * n_t + t, 0)),   # f32
            pl.BlockSpec((tile, C), lambda bv, t: (bv * n_t + t, 0)),   # bf16
            pl.BlockSpec((tile, 3), lambda bv, t: (bv * n_t + t, 0)),   # xyz
        ),
        compiler_params=pltpu.CompilerParams(
            dimension_semantics=("parallel", "parallel"),
            vmem_limit_bytes=_VMEM_LIMIT),
    )(M, feat_flat, depth_flat, w1, b1, w2_bf16, b2)


# ---------------------------------------------------------------------------
# Kernel 2: tiled voxel scatter_mean via one-hot matmul accumulation
# ---------------------------------------------------------------------------
def _scatter_mean_kernel(nvox_ref, p2v_ref, feat_ref, invc_ref, out_ref, acc_ref):
    b = pl.program_id(0)
    vi = pl.program_id(1)
    pi = pl.program_id(2)
    Tv = acc_ref.shape[0]
    Tp = p2v_ref.shape[-1]

    @pl.when(pi == 0)
    def _():
        acc_ref[...] = jnp.zeros_like(acc_ref)

    v_start = vi * Tv

    # Skip voxel tiles that lie entirely in the per-batch padding region.
    @pl.when(v_start < nvox_ref[b])
    def _():
        p2v = p2v_ref[0]                                        # (1, Tp) int32
        vox_ids = v_start + lax.broadcasted_iota(jnp.int32, (Tv, Tp), 0)
        onehot = (vox_ids == p2v).astype(jnp.bfloat16)
        acc_ref[...] += jnp.dot(onehot, feat_ref[0],
                                preferred_element_type=jnp.float32)

    @pl.when(pi == pl.num_programs(2) - 1)
    def _():
        out_ref[0] = (acc_ref[...] * invc_ref[0]).astype(out_ref.dtype)


def voxel_scatter_mean(p2v, nvox, inv_counts, feats_bf16, target_tile=512):
    """feats_bf16: (B, Np, C) bf16 (MXU operand dtype; halves re-read traffic)."""
    B, Np, C = feats_bf16.shape
    Tp = _largest_aligned_divisor(Np, target_tile, 128)   # point tile (lanes of p2v)
    Tv = _largest_aligned_divisor(Np, target_tile, 128)   # voxel tile (output rows)
    p2v3 = p2v.reshape(B, 1, Np).astype(jnp.int32)
    invc3 = inv_counts.reshape(B, Np, 1).astype(jnp.float32)
    return pl.pallas_call(
        _scatter_mean_kernel,
        out_shape=jax.ShapeDtypeStruct((B, Np, C), jnp.float32),
        grid=(B, Np // Tv, Np // Tp),
        in_specs=[
            pl.BlockSpec(memory_space=pltpu.MemorySpace.SMEM),           # nvox (B,)
            pl.BlockSpec((1, 1, Tp), lambda b, vi, pi: (b, 0, pi)),      # p2v
            pl.BlockSpec((1, Tp, C), lambda b, vi, pi: (b, pi, 0)),      # features bf16
            pl.BlockSpec((1, Tv, 1), lambda b, vi, pi: (b, vi, 0)),      # 1/count
        ],
        out_specs=pl.BlockSpec((1, Tv, C), lambda b, vi, pi: (b, vi, 0)),
        scratch_shapes=[pltpu.VMEM((Tv, C), jnp.float32)],
        compiler_params=pltpu.CompilerParams(
            dimension_semantics=("parallel", "parallel", "arbitrary"),
            vmem_limit_bytes=_VMEM_LIMIT),
    )(nvox, p2v3, feats_bf16, invc3)


# ---------------------------------------------------------------------------
# JAX glue: batched voxelization (sort-based contiguous voxel ids)
# ---------------------------------------------------------------------------
def voxelize(xyz, voxel_size):
    """xyz: (B, Np, 3) -> p2v (B, Np) int32 contiguous ids, nvox (B,) int32.
    Ids follow ascending voxel-key order (matches sorted torch.unique)."""
    B, Np, _ = xyz.shape
    vox = jnp.floor(xyz / voxel_size).astype(jnp.int32)
    vox = vox - vox.min(axis=1, keepdims=True)
    ext = vox.max(axis=1, keepdims=True) + 1                       # (B, 1, 3)
    key = (vox[..., 0] * ext[..., 1] + vox[..., 1]) * ext[..., 2] + vox[..., 2]
    order = jnp.argsort(key, axis=1)
    skey = jnp.take_along_axis(key, order, axis=1)
    newseg = jnp.concatenate(
        [jnp.zeros((B, 1), jnp.int32),
         (skey[:, 1:] != skey[:, :-1]).astype(jnp.int32)], axis=1)
    rank = jnp.cumsum(newseg, axis=1)                              # sorted-order ids
    bidx = jnp.arange(B)[:, None]
    p2v = jnp.zeros((B, Np), jnp.int32).at[bidx, order].set(rank)
    nvox = rank[:, -1] + 1
    return p2v, nvox.astype(jnp.int32)


def _camera_matrices(poses, intrinsics):
    BV = poses.shape[0] * poses.shape[1]
    M = jnp.einsum("bij,bjk->bik",
                   poses.reshape(BV, 4, 4).astype(jnp.float32),
                   jnp.linalg.inv(intrinsics.reshape(BV, 4, 4).astype(jnp.float32)))
    return M[:, :3, :].reshape(BV, 12)


# ---------------------------------------------------------------------------
# Forward: mirrors RGBDVideoTower.forward(features, depths, poses, intrinsics)
# ---------------------------------------------------------------------------
def _forward_with_aux(features, depths, poses, intrinsics, params):
    B, V, C, H, W = features.shape
    HW = H * W
    Np = V * HW
    N = B * Np

    M = _camera_matrices(poses, intrinsics)                             # (BV, 12)
    feat_flat = jnp.transpose(features, (0, 1, 3, 4, 2)).reshape(N, C).astype(jnp.float32)
    depth_flat = depths.reshape(N, 1).astype(jnp.float32)

    w1, b1, w2, b2 = params
    vf_flat, vf16_flat, xyz_flat = spatial_aware_fused(
        M, feat_flat, depth_flat,
        w1.astype(jnp.float32), b1.astype(jnp.float32),
        w2.astype(jnp.bfloat16), b2.astype(jnp.float32),
        img_w=W, hw=HW)

    video_features = vf_flat.reshape(B, Np, C)
    video_features_bf16 = vf16_flat.reshape(B, Np, C)
    xyz = xyz_flat.reshape(B, Np, 3)

    # voxelize + scatter_mean pooling
    p2v, nvox = voxelize(xyz, VOXEL_SIZE)
    counts = jax.vmap(lambda p: jnp.zeros((Np,), jnp.float32).at[p].add(1.0))(p2v)
    inv_counts = 1.0 / jnp.maximum(counts, 1.0)
    pooled = voxel_scatter_mean(p2v, nvox, inv_counts, video_features_bf16)  # (B, Np, C)
    batch_offset = jnp.cumsum(nvox).astype(jnp.int32)
    return pooled, batch_offset, (xyz, video_features, p2v, nvox)


def rgbd_video_tower_forward(features, depths, poses, intrinsics, params):
    pooled, batch_offset, _ = _forward_with_aux(
        features, depths, poses, intrinsics, params)
    return pooled, batch_offset


# ---------------------------------------------------------------------------
# Pure-JAX reference pieces (for a numeric sanity check in __main__)
# ---------------------------------------------------------------------------
def _ref_spatial(features, depths, poses, intrinsics, params):
    B, V, C, H, W = features.shape
    BV, HW = B * V, H * W
    Minv = jnp.einsum("bij,bjk->bik",
                      poses.reshape(BV, 4, 4).astype(jnp.float32),
                      jnp.linalg.inv(intrinsics.reshape(BV, 4, 4).astype(jnp.float32)))[:, :3, :]
    u = lax.broadcasted_iota(jnp.float32, (H, W), 1)
    v = lax.broadcasted_iota(jnp.float32, (H, W), 0)
    d = depths.reshape(BV, H, W).astype(jnp.float32)
    pts = jnp.stack([u * d, v * d, d, jnp.ones_like(d)], axis=-1)        # (BV,H,W,4)
    xyz = jnp.einsum("bri,bhwi->bhwr", Minv, pts).reshape(BV * HW, 3)
    feat = jnp.transpose(features, (0, 1, 3, 4, 2)).reshape(BV * HW, C).astype(jnp.float32)
    w1, b1, w2, b2 = params
    h = jnp.maximum(xyz @ w1 + b1, 0.0)
    vf = feat + h @ w2 + b2
    return vf, xyz


def _ref_scatter_mean(vf, p2v, num_segments):
    def one(f, p):
        s = jax.ops.segment_sum(f, p, num_segments=num_segments)
        c = jax.ops.segment_sum(jnp.ones((p.shape[0],), jnp.float32), p,
                                num_segments=num_segments)
        return s / jnp.maximum(c, 1.0)[:, None]
    return jax.vmap(one)(vf, p2v)


if __name__ == "__main__":
    B, V, C, H, W = 2, 2, 32, 8, 8
    HD = 64  # pos-emb MLP hidden dim (stand-in for latent_dim=4096)
    Np = V * H * W

    key = jax.random.PRNGKey(0)
    kf, kd, kt, k1, k2, k3, k4 = jax.random.split(key, 7)

    features = jax.random.normal(kf, (B, V, C, H, W), jnp.float32)
    depths = jax.random.uniform(kd, (B, V, H, W), jnp.float32, 0.5, 3.0)
    intrinsics = jnp.broadcast_to(
        jnp.array([[8.0, 0.0, 4.0, 0.0],
                   [0.0, 8.0, 4.0, 0.0],
                   [0.0, 0.0, 1.0, 0.0],
                   [0.0, 0.0, 0.0, 1.0]], jnp.float32),
        (B, V, 4, 4))
    trans = jax.random.uniform(kt, (B, V, 3), jnp.float32, -0.5, 0.5)
    poses = jnp.broadcast_to(jnp.eye(4, dtype=jnp.float32), (B, V, 4, 4))
    poses = poses.at[..., :3, 3].set(trans)

    # Deterministic MLP parameters (PositionEmbeddingLearnedMLP stand-in).
    w1 = 0.1 * jax.random.normal(k1, (3, HD), jnp.float32)
    b1 = 0.01 * jax.random.normal(k2, (1, HD), jnp.float32)
    w2 = 0.1 * jax.random.normal(k3, (HD, C), jnp.float32)
    b2 = 0.01 * jax.random.normal(k4, (1, C), jnp.float32)
    params = (w1, b1, w2, b2)

    pooled, batch_offset, (xyz, vf, p2v, nvox) = _forward_with_aux(
        features, depths, poses, intrinsics, params)
    jax.block_until_ready((pooled, batch_offset))
    assert pooled.shape == (B, Np, C)
    assert batch_offset.shape == (B,)

    # --- numeric sanity check against a pure-JAX f32 reference ---
    vf_ref, xyz_ref = _ref_spatial(features, depths, poses, intrinsics, params)
    xyz_err = float(jnp.max(jnp.abs(xyz.reshape(-1, 3) - xyz_ref)))
    vf_err = float(jnp.max(jnp.abs(vf.reshape(-1, C) - vf_ref)))
    pooled_ref = _ref_scatter_mean(vf, p2v, Np)        # same p2v / inputs as kernel
    pool_err = float(jnp.max(jnp.abs(pooled - pooled_ref)))
    assert xyz_err < 1e-3, xyz_err
    assert vf_err < 3e-2, vf_err            # bf16 MXU operands in the pos-emb GEMM
    assert pool_err < 5e-2, pool_err        # bf16 MXU operands in the scatter GEMM

    print("KERNEL_OK")
</pallas_src>

<mosaic_0001>
module attributes {stable_mosaic.version = 11 : i64} {
  func.func @kernel(%arg0: i32, %arg1: i32, %arg2: memref<4x12xf32, #tpu.memory_space<smem>>, %arg3: memref<64x32xf32, #tpu.memory_space<vmem>>, %arg4: memref<64x1xf32, #tpu.memory_space<vmem>>, %arg5: memref<3x64xf32, #tpu.memory_space<vmem>>, %arg6: memref<1x64xf32, #tpu.memory_space<vmem>>, %arg7: memref<64x32xbf16, #tpu.memory_space<vmem>>, %arg8: memref<1x32xf32, #tpu.memory_space<vmem>>, %arg9: memref<64x32xf32, #tpu.memory_space<vmem>>, %arg10: memref<64x32xbf16, #tpu.memory_space<vmem>>, %arg11: memref<64x3xf32, #tpu.memory_space<vmem>>) attributes {dimension_semantics = [#tpu.dimension_semantics<parallel>, #tpu.dimension_semantics<parallel>], iteration_bounds = array<i64: 4, 1>, scalar_prefetch = 0 : i64, scratch_operands = 0 : i64, tpu.core_type = #tpu.core_type<tc>, window_params = [{transform_indices = @transform_0, window_bounds = array<i64: 4, 12>}, {transform_indices = @transform_1, window_bounds = array<i64: 64, 32>}, {transform_indices = @transform_2, window_bounds = array<i64: 64, 1>}, {pipeline_mode = #tpu.pipeline_mode<synchronous>, transform_indices = @transform_3, window_bounds = array<i64: 3, 64>}, {pipeline_mode = #tpu.pipeline_mode<synchronous>, transform_indices = @transform_4, window_bounds = array<i64: 1, 64>}, {pipeline_mode = #tpu.pipeline_mode<synchronous>, transform_indices = @transform_5, window_bounds = array<i64: 64, 32>}, {pipeline_mode = #tpu.pipeline_mode<synchronous>, transform_indices = @transform_6, window_bounds = array<i64: 1, 32>}, {transform_indices = @transform_7, window_bounds = array<i64: 64, 32>}, {transform_indices = @transform_8, window_bounds = array<i64: 64, 32>}, {transform_indices = @transform_9, window_bounds = array<i64: 64, 3>}]} {
    %c0 = arith.constant 0 : index
    %c0_0 = arith.constant 0 : index
    %0 = vector.load %arg4[%c0, %c0_0] : memref<64x1xf32, #tpu.memory_space<vmem>>, vector<64x1xf32>
    %c64_i32 = arith.constant 64 : i32
    %1 = arith.muli %arg1, %c64_i32 : i32
    %2 = tpu.iota {dimensions = array<i32: 0>} : vector<64x1xi32>
    %3 = vector.broadcast %1 : i32 to vector<64x1xi32>
    %4 = arith.addi %3, %2 : vector<64x1xi32>
    %5 = arith.sitofp %4 : vector<64x1xi32> to vector<64x1xf32>
    %cst = arith.constant 5.000000e-01 : f32
    %6 = vector.broadcast %cst : f32 to vector<64x1xf32>
    %7 = arith.addf %5, %6 : vector<64x1xf32>
    %cst_1 = arith.constant 1.250000e-01 : f32
    %8 = vector.broadcast %cst_1 : f32 to vector<64x1xf32>
    %9 = arith.mulf %7, %8 : vector<64x1xf32>
    %10 = math.floor %9 : vector<64x1xf32>
    %cst_2 = arith.constant 8.000000e+00 : f32
    %11 = vector.broadcast %cst_2 : f32 to vector<64x1xf32>
    %12 = arith.mulf %10, %11 : vector<64x1xf32>
    %13 = arith.subf %5, %12 : vector<64x1xf32>
    %14 = arith.mulf %13, %0 : vector<64x1xf32>
    %15 = arith.mulf %10, %0 : vector<64x1xf32>
    %16 = arith.index_cast %arg0 : i32 to index
    %c0_3 = arith.constant 0 : index
    %17 = memref.load %arg2[%16, %c0_3] : memref<4x12xf32, #tpu.memory_space<smem>>
    %18 = vector.broadcast %17 : f32 to vector<64x1xf32>
    %19 = arith.mulf %18, %14 : vector<64x1xf32>
    %20 = arith.index_cast %arg0 : i32 to index
    %c1 = arith.constant 1 : index
    %21 = memref.load %arg2[%20, %c1] : memref<4x12xf32, #tpu.memory_space<smem>>
    %22 = vector.broadcast %21 : f32 to vector<64x1xf32>
    %23 = arith.mulf %22, %15 : vector<64x1xf32>
    %24 = arith.addf %19, %23 : vector<64x1xf32>
    %25 = arith.index_cast %arg0 : i32 to index
    %c2 = arith.constant 2 : index
    %26 = memref.load %arg2[%25, %c2] : memref<4x12xf32, #tpu.memory_space<smem>>
    %27 = vector.broadcast %26 : f32 to vector<64x1xf32>
    %28 = arith.mulf %27, %0 : vector<64x1xf32>
    %29 = arith.addf %24, %28 : vector<64x1xf32>
    %30 = arith.index_cast %arg0 : i32 to index
    %c3 = arith.constant 3 : index
    %31 = memref.load %arg2[%30, %c3] : memref<4x12xf32, #tpu.memory_space<smem>>
    %32 = vector.broadcast %31 : f32 to vector<64x1xf32>
    %33 = arith.addf %29, %32 : vector<64x1xf32>
    %34 = arith.index_cast %arg0 : i32 to index
    %c4 = arith.constant 4 : index
    %35 = memref.load %arg2[%34, %c4] : memref<4x12xf32, #tpu.memory_space<smem>>
    %36 = vector.broadcast %35 : f32 to vector<64x1xf32>
    %37 = arith.mulf %36, %14 : vector<64x1xf32>
    %38 = arith.index_cast %arg0 : i32 to index
    %c5 = arith.constant 5 : index
    %39 = memref.load %arg2[%38, %c5] : memref<4x12xf32, #tpu.memory_space<smem>>
    %40 = vector.broadcast %39 : f32 to vector<64x1xf32>
    %41 = arith.mulf %40, %15 : vector<64x1xf32>
    %42 = arith.addf %37, %41 : vector<64x1xf32>
    %43 = arith.index_cast %arg0 : i32 to index
    %c6 = arith.constant 6 : index
    %44 = memref.load %arg2[%43, %c6] : memref<4x12xf32, #tpu.memory_space<smem>>
    %45 = vector.broadcast %44 : f32 to vector<64x1xf32>
    %46 = arith.mulf %45, %0 : vector<64x1xf32>
    %47 = arith.addf %42, %46 : vector<64x1xf32>
    %48 = arith.index_cast %arg0 : i32 to index
    %c7 = arith.constant 7 : index
    %49 = memref.load %arg2[%48, %c7] : memref<4x12xf32, #tpu.memory_space<smem>>
    %50 = vector.broadcast %49 : f32 to vector<64x1xf32>
    %51 = arith.addf %47, %50 : vector<64x1xf32>
    %52 = arith.index_cast %arg0 : i32 to index
    %c8 = arith.constant 8 : index
    %53 = memref.load %arg2[%52, %c8] : memref<4x12xf32, #tpu.memory_space<smem>>
    %54 = vector.broadcast %53 : f32 to vector<64x1xf32>
    %55 = arith.mulf %54, %14 : vector<64x1xf32>
    %56 = arith.index_cast %arg0 : i32 to index
    %c9 = arith.constant 9 : index
    %57 = memref.load %arg2[%56, %c9] : memref<4x12xf32, #tpu.memory_space<smem>>
    %58 = vector.broadcast %57 : f32 to vector<64x1xf32>
    %59 = arith.mulf %58, %15 : vector<64x1xf32>
    %60 = arith.addf %55, %59 : vector<64x1xf32>
    %61 = arith.index_cast %arg0 : i32 to index
    %c10 = arith.constant 10 : index
    %62 = memref.load %arg2[%61, %c10] : memref<4x12xf32, #tpu.memory_space<smem>>
    %63 = vector.broadcast %62 : f32 to vector<64x1xf32>
    %64 = arith.mulf %63, %0 : vector<64x1xf32>
    %65 = arith.addf %60, %64 : vector<64x1xf32>
    %66 = arith.index_cast %arg0 : i32 to index
    %c11 = arith.constant 11 : index
    %67 = memref.load %arg2[%66, %c11] : memref<4x12xf32, #tpu.memory_space<smem>>
    %68 = vector.broadcast %67 : f32 to vector<64x1xf32>
    %69 = arith.addf %65, %68 : vector<64x1xf32>
    %c0_4 = arith.constant 0 : index
    %c0_5 = arith.constant 0 : index
    %70 = vector.load %arg11[%c0_4, %c0_5] : memref<64x3xf32, #tpu.memory_space<vmem>>, vector<64x1xf32>
    tpu.vector_store %arg11[%c0_4, %c0_5], %33 {strides = array<i32>} : memref<64x3xf32, #tpu.memory_space<vmem>>, vector<64x1xf32>,
    %c0_6 = arith.constant 0 : index
    %c1_7 = arith.constant 1 : index
    %71 = vector.load %arg11[%c0_6, %c1_7] : memref<64x3xf32, #tpu.memory_space<vmem>>, vector<64x1xf32>
    tpu.vector_store %arg11[%c0_6, %c1_7], %51 {strides = array<i32>} : memref<64x3xf32, #tpu.memory_space<vmem>>, vector<64x1xf32>,
    %c0_8 = arith.constant 0 : index
    %c2_9 = arith.constant 2 : index
    %72 = vector.load %arg11[%c0_8, %c2_9] : memref<64x3xf32, #tpu.memory_space<vmem>>, vector<64x1xf32>
    tpu.vector_store %arg11[%c0_8, %c2_9], %69 {strides = array<i32>} : memref<64x3xf32, #tpu.memory_space<vmem>>, vector<64x1xf32>,
    %c0_10 = arith.constant 0 : index
    %c0_11 = arith.constant 0 : index
    %73 = vector.load %arg5[%c0_10, %c0_11] : memref<3x64xf32, #tpu.memory_space<vmem>>, vector<1x64xf32>
    %74 = vector.broadcast %33 : vector<64x1xf32> to vector<64x64xf32>
    %75 = vector.broadcast %73 : vector<1x64xf32> to vector<64x64xf32>
    %76 = arith.mulf %74, %75 : vector<64x64xf32>
    %c1_12 = arith.constant 1 : index
    %c0_13 = arith.constant 0 : index
    %77 = vector.load %arg5[%c1_12, %c0_13] : memref<3x64xf32, #tpu.memory_space<vmem>>, vector<1x64xf32>
    %78 = vector.broadcast %51 : vector<64x1xf32> to vector<64x64xf32>
    %79 = vector.broadcast %77 : vector<1x64xf32> to vector<64x64xf32>
    %80 = arith.mulf %78, %79 : vector<64x64xf32>
    %81 = arith.addf %76, %80 : vector<64x64xf32>
    %c2_14 = arith.constant 2 : index
    %c0_15 = arith.constant 0 : index
    %82 = vector.load %arg5[%c2_14, %c0_15] : memref<3x64xf32, #tpu.memory_space<vmem>>, vector<1x64xf32>
    %83 = vector.broadcast %69 : vector<64x1xf32> to vector<64x64xf32>
    %84 = vector.broadcast %82 : vector<1x64xf32> to vector<64x64xf32>
    %85 = arith.mulf %83, %84 : vector<64x64xf32>
    %86 = arith.addf %81, %85 : vector<64x64xf32>
    %c0_16 = arith.constant 0 : index
    %c0_17 = arith.constant 0 : index
    %87 = vector.load %arg6[%c0_16, %c0_17] : memref<1x64xf32, #tpu.memory_space<vmem>>, vector<1x64xf32>
    %88 = vector.broadcast %87 : vector<1x64xf32> to vector<64x64xf32>
    %89 = arith.addf %86, %88 : vector<64x64xf32>
    %cst_18 = arith.constant 0.000000e+00 : f32
    %90 = vector.broadcast %cst_18 : f32 to vector<64x64xf32>
    %91 = arith.maximumf %89, %90 : vector<64x64xf32>
    %92 = arith.truncf %91 : vector<64x64xf32> to vector<64x64xbf16>
    %c0_19 = arith.constant 0 : index
    %c0_20 = arith.constant 0 : index
    %93 = vector.load %arg7[%c0_19, %c0_20] : memref<64x32xbf16, #tpu.memory_space<vmem>>, vector<64x32xbf16>
    %cst_21 = arith.constant dense<0.000000e+00> : vector<64x32xf32>
    %94 = tpu.matmul %92, %93, %cst_21 {dimension_numbers = #tpu.dot_dimension_numbers<[1], [0], [0], [1], [0, 0, 1, 1], [], []>} : vector<64x64xbf16>, vector<64x32xbf16>, vector<64x32xf32> -> vector<64x32xf32>
    %c0_22 = arith.constant 0 : index
    %c0_23 = arith.constant 0 : index
    %95 = vector.load %arg8[%c0_22, %c0_23] : memref<1x32xf32, #tpu.memory_space<vmem>>, vector<1x32xf32>
    %96 = vector.broadcast %95 : vector<1x32xf32> to vector<64x32xf32>
    %97 = arith.addf %94, %96 : vector<64x32xf32>
    %c0_24 = arith.constant 0 : index
    %c0_25 = arith.constant 0 : index
    %98 = vector.load %arg3[%c0_24, %c0_25] : memref<64x32xf32, #tpu.memory_space<vmem>>, vector<64x32xf32>
    %99 = arith.addf %98, %97 : vector<64x32xf32>
    %c0_26 = arith.constant 0 : index
    %c0_27 = arith.constant 0 : index
    %100 = vector.load %arg9[%c0_26, %c0_27] : memref<64x32xf32, #tpu.memory_space<vmem>>, vector<64x32xf32>
    tpu.vector_store %arg9[%c0_26, %c0_27], %99 {strides = array<i32>} : memref<64x32xf32, #tpu.memory_space<vmem>>, vector<64x32xf32>,
    %101 = arith.truncf %99 : vector<64x32xf32> to vector<64x32xbf16>
    %c0_28 = arith.constant 0 : index
    %c0_29 = arith.constant 0 : index
    %102 = vector.load %arg10[%c0_28, %c0_29] : memref<64x32xbf16, #tpu.memory_space<vmem>>, vector<64x32xbf16>
    tpu.vector_store %arg10[%c0_28, %c0_29], %101 {strides = array<i32>} : memref<64x32xbf16, #tpu.memory_space<vmem>>, vector<64x32xbf16>,
    return
  }
  func.func @transform_0(%arg0: i32, %arg1: i32) -> (i32, i32) {
    %c0_i32 = arith.constant 0 : i32
    %c0_i32_0 = arith.constant 0 : i32
    %c0_i32_1 = arith.constant 0 : i32
    return %c0_i32, %c0_i32_0 : i32, i32
  }
  func.func @transform_1(%arg0: i32, %arg1: i32) -> (i32, i32) {
    %c1_i32 = arith.constant 1 : i32
    %0 = arith.muli %arg0, %c1_i32 : i32
    %1 = arith.addi %0, %arg1 : i32
    %c0_i32 = arith.constant 0 : i32
    %c0_i32_0 = arith.constant 0 : i32
    return %1, %c0_i32 : i32, i32
  }
  func.func @transform_2(%arg0: i32, %arg1: i32) -> (i32, i32) {
    %c1_i32 = arith.constant 1 : i32
    %0 = arith.muli %arg0, %c1_i32 : i32
    %1 = arith.addi %0, %arg1 : i32
    %c0_i32 = arith.constant 0 : i32
    %c0_i32_0 = arith.constant 0 : i32
    return %1, %c0_i32 : i32, i32
  }
  func.func @transform_3(%arg0: i32, %arg1: i32) -> (i32, i32) {
    %c0_i32 = arith.constant 0 : i32
    %c0_i32_0 = arith.constant 0 : i32
    %c0_i32_1 = arith.constant 0 : i32
    return %c0_i32, %c0_i32_0 : i32, i32
  }
  func.func @transform_4(%arg0: i32, %arg1: i32) -> (i32, i32) {
    %c0_i32 = arith.constant 0 : i32
    %c0_i32_0 = arith.constant 0 : i32
    %c0_i32_1 = arith.constant 0 : i32
    return %c0_i32, %c0_i32_0 : i32, i32
  }
  func.func @transform_5(%arg0: i32, %arg1: i32) -> (i32, i32) {
    %c0_i32 = arith.constant 0 : i32
    %c0_i32_0 = arith.constant 0 : i32
    %c0_i32_1 = arith.constant 0 : i32
    return %c0_i32, %c0_i32_0 : i32, i32
  }
  func.func @transform_6(%arg0: i32, %arg1: i32) -> (i32, i32) {
    %c0_i32 = arith.constant 0 : i32
    %c0_i32_0 = arith.constant 0 : i32
    %c0_i32_1 = arith.constant 0 : i32
    return %c0_i32, %c0_i32_0 : i32, i32
  }
  func.func @transform_7(%arg0: i32, %arg1: i32) -> (i32, i32) {
    %c1_i32 = arith.constant 1 : i32
    %0 = arith.muli %arg0, %c1_i32 : i32
    %1 = arith.addi %0, %arg1 : i32
    %c0_i32 = arith.constant 0 : i32
    %c0_i32_0 = arith.constant 0 : i32
    return %1, %c0_i32 : i32, i32
  }
  func.func @transform_8(%arg0: i32, %arg1: i32) -> (i32, i32) {
    %c1_i32 = arith.constant 1 : i32
    %0 = arith.muli %arg0, %c1_i32 : i32
    %1 = arith.addi %0, %arg1 : i32
    %c0_i32 = arith.constant 0 : i32
    %c0_i32_0 = arith.constant 0 : i32
    return %1, %c0_i32 : i32, i32
  }
  func.func @transform_9(%arg0: i32, %arg1: i32) -> (i32, i32) {
    %c1_i32 = arith.constant 1 : i32
    %0 = arith.muli %arg0, %c1_i32 : i32
    %1 = arith.addi %0, %arg1 : i32
    %c0_i32 = arith.constant 0 : i32
    %c0_i32_0 = arith.constant 0 : i32
    return %1, %c0_i32 : i32, i32
  }
}

</mosaic_0001>

<llo_original>
// kernel: tpu_custom_call.1
$region0: #{tpu_custom_call.1}
  #allocation0 [shape = 'u32[]', space=smem, size = 0x4, offset = 0x4, fixed_abs, tag = 'smem constant byte address 0x4 - core index']
  #allocation1 [shape = 'u32[144,128]{1,0:T(1,128)}', space=vmem, size = 0x12000, scoped, tag = 'internal scratch']
  %s0 = inlined_call_operand.vmem [shape: f32[4,12], index: 0, kind: input, shape index: {}]
  %s1 = inlined_call_operand.vmem [shape: f32[256,32], index: 1, kind: input, shape index: {}]
  %s2 = inlined_call_operand.vmem [shape: f32[256,1], index: 2, kind: input, shape index: {}]
  %s3 = inlined_call_operand.vmem [shape: f32[3,64], index: 3, kind: input, shape index: {}]
  %s4 = inlined_call_operand.vmem [shape: f32[1,64], index: 4, kind: input, shape index: {}]
  %s5 = inlined_call_operand.vmem [shape: bf16[64,32], index: 5, kind: input, shape index: {}]
  %s6 = inlined_call_operand.vmem [shape: f32[1,32], index: 6, kind: input, shape index: {}]
  %s7 = inlined_call_operand.vmem [shape: f32[256,32], index: 7, kind: output, shape index: {0}]
  %s8 = inlined_call_operand.vmem [shape: bf16[256,32], index: 8, kind: output, shape index: {1}]
  %s9 = inlined_call_operand.vmem [shape: f32[256,3], index: 9, kind: output, shape index: {2}]
  %10 = xla_tuple %s7, %s8, %s9
  %s11 = sld [smem:[#allocation0]]
  $region81: #{tpu_custom_call.1} parent=0
    _
  %s13 = ssub.s32 1, %s11
  %s14 = scalar_select 0, %s13, %s11
  $region1: #{tpu_custom_call.1} parent=0
    #allocation2 [shape = 'u8[2048]{0}', space=smem, size = 0x800, scoped, tag = 'input window, operand 0, single buffered']
    #allocation3 [shape = 's32[2]{0}', space=sflag, size = 0x8, scoped, tag = 'scoped memory for tpu_custom_call.1']
    %15 = vsyncpa [#allocation3], 0
    loop: start=0, step=1, limit=6
    $region2: #{tpu_custom_call.1} parent=1 // loop_pre_header
      _
    $region3: #{tpu_custom_call.1} parent=1 // loop_header
      %s17 = sphi 0, %s21
      %p18 = scmp.ge.s32.totalorder %s17, 6
      %s24 = sphi 0, %s36
      %s25 = sphi 0, %s32
      %s26 = sphi 0, %s24
      %s27 = sphi 0, %s25
      %s28 = sphi 0, %s26
      %s29 = sphi 0, %s27
      %s37 = sphi 0, %s37
      %s39 = sphi 0, %s37
      %s40 = sphi 0, %s39
      %s54 = sphi 0, %s40
      %s62 = sphi 0, %s64
      %s65 = sphi 0, %s62
      %s66 = sphi 0, %s65
      %s82 = sphi 0, %s66
      %s90 = sphi 0, %s92
      %s93 = sphi 0, %s90
      %s94 = sphi 0, %s93
      %s110 = sphi 0, %s94
      %s114 = sphi 0, %s114
      %s116 = sphi 0, %s114
      %s117 = sphi 0, %s116
      %s131 = sphi 0, %s117
      %s135 = sphi 0, %s135
      %s137 = sphi 0, %s135
      %s138 = sphi 0, %s137
      %s152 = sphi 0, %s138
      %s156 = sphi 0, %s156
      %s158 = sphi 0, %s156
      %s159 = sphi 0, %s158
      %s173 = sphi 0, %s159
      %s177 = sphi 0, %s177
      %s179 = sphi 0, %s177
      %s180 = sphi 0, %s179
      %s194 = sphi 0, %s180
      %s202 = sphi 0, %s204
      %s205 = sphi 0, %s202
      %s206 = sphi 0, %s205
      %s222 = sphi 0, %s206
      %s230 = sphi 0, %s232
      %s233 = sphi 0, %s230
      %s234 = sphi 0, %s233
      %s250 = sphi 0, %s234
      %s258 = sphi 0, %s260
      %s261 = sphi 0, %s258
      %s262 = sphi 0, %s261
      %s278 = sphi 0, %s262
    $region4: #{tpu_custom_call.1} parent=1 // loop_header_branch
      %20 = sbr.rel (%p18) target = $region8
    $region5: #{tpu_custom_call.1} parent=1 // loop_body
      %s22 = ssub.s32 %s17, 1
      %s23 = ssub.s32 %s17, 2
      %s30 = sadd.s32 1, %s25
      %p31 = scmp.ge.s32.totalorder %s30, 1
      %s32 = scalar_select %p31, 0, %s30
      %s33 = sadd.s32 1, %s24
      %s34 = scalar_select %p31, %s33, %s24
      %p35 = scmp.ge.s32.totalorder %s34, 4
      %s36 = scalar_select %p35, 0, %s34
      %s38 = sadd.s32 %s37, 1
      %p41 = scmp.eq.s32.totalorder %s17, 3
      %p42 = scmp.ne.s32.totalorder %s37, %s39
      %p43 = scmp.eq.s32.totalorder %s17, 0
      %p44 = por %p42, %p43
      %p45 = scmp.ne.s32.totalorder %s37, %s39
      %p46 = scmp.eq.s32.totalorder %s22, 3
      %p47 = por %p45, %p46
      %p48 = scmp.ne.s32.totalorder %s39, %s40
      %p49 = scmp.eq.s32.totalorder %s22, 0
      %p50 = por %p48, %p49
      %p51 = scmp.ne.s32.totalorder %s39, %s40
      %p52 = scmp.eq.s32.totalorder %s23, 3
      %p53 = por %p51, %p52
      %p55 = scmp.ne.s32.totalorder %s40, %s54
      %p56 = scmp.eq.s32.totalorder %s23, 0
      %p57 = por %p55, %p56
      %s58 = sadd.s32 %s24, %s25
      %s59 = sadd.s32 %s36, %s32
      %s60 = ssub.s32 %s58, %s59
      %p61 = scmp.eq.s32.totalorder %s60, 0
      %s63 = sadd.s32 %s62, 1
      %s64 = scalar_select %p61, %s62, %s63
      %p67 = pneg %p61
      %p68 = scmp.eq.s32.totalorder %s17, 3
      %p69 = por %p67, %p68
      %p70 = scmp.ne.s32.totalorder %s62, %s65
      %p71 = scmp.eq.s32.totalorder %s17, 0
      %p72 = por %p70, %p71
      %p73 = scmp.ne.s32.totalorder %s62, %s65
      %p74 = scmp.eq.s32.totalorder %s22, 3
      %p75 = por %p73, %p74
      %p76 = scmp.ne.s32.totalorder %s65, %s66
      %p77 = scmp.eq.s32.totalorder %s22, 0
      %p78 = por %p76, %p77
      %p79 = scmp.ne.s32.totalorder %s65, %s66
      %p80 = scmp.eq.s32.totalorder %s23, 3
      %p81 = por %p79, %p80
      %p83 = scmp.ne.s32.totalorder %s66, %s82
      %p84 = scmp.eq.s32.totalorder %s23, 0
      %p85 = por %p83, %p84
      %s86 = sadd.s32 %s24, %s25
      %s87 = sadd.s32 %s36, %s32
      %s88 = ssub.s32 %s86, %s87
      %p89 = scmp.eq.s32.totalorder %s88, 0
      %s91 = sadd.s32 %s90, 1
      %s92 = scalar_select %p89, %s90, %s91
      %p95 = pneg %p89
      %p96 = scmp.eq.s32.totalorder %s17, 3
      %p97 = por %p95, %p96
      %p98 = scmp.ne.s32.totalorder %s90, %s93
      %p99 = scmp.eq.s32.totalorder %s17, 0
      %p100 = por %p98, %p99
      %p101 = scmp.ne.s32.totalorder %s90, %s93
      %p102 = scmp.eq.s32.totalorder %s22, 3
      %p103 = por %p101, %p102
      %p104 = scmp.ne.s32.totalorder %s93, %s94
      %p105 = scmp.eq.s32.totalorder %s22, 0
      %p106 = por %p104, %p105
      %p107 = scmp.ne.s32.totalorder %s93, %s94
      %p108 = scmp.eq.s32.totalorder %s23, 3
      %p109 = por %p107, %p108
      %p111 = scmp.ne.s32.totalorder %s94, %s110
      %p112 = scmp.eq.s32.totalorder %s23, 0
      %p113 = por %p111, %p112
      %s115 = sadd.s32 %s114, 1
      %p118 = scmp.eq.s32.totalorder %s17, 3
      %p119 = scmp.ne.s32.totalorder %s114, %s116
      %p120 = scmp.eq.s32.totalorder %s17, 0
      %p121 = por %p119, %p120
      %p122 = scmp.ne.s32.totalorder %s114, %s116
      %p123 = scmp.eq.s32.totalorder %s22, 3
      %p124 = por %p122, %p123
      %p125 = scmp.ne.s32.totalorder %s116, %s117
      %p126 = scmp.eq.s32.totalorder %s22, 0
      %p127 = por %p125, %p126
      %p128 = scmp.ne.s32.totalorder %s116, %s117
      %p129 = scmp.eq.s32.totalorder %s23, 3
      %p130 = por %p128, %p129
      %p132 = scmp.ne.s32.totalorder %s117, %s131
      %p133 = scmp.eq.s32.totalorder %s23, 0
      %p134 = por %p132, %p133
      %s136 = sadd.s32 %s135, 1
      %p139 = scmp.eq.s32.totalorder %s17, 3
      %p140 = scmp.ne.s32.totalorder %s135, %s137
      %p141 = scmp.eq.s32.totalorder %s17, 0
      %p142 = por %p140, %p141
      %p143 = scmp.ne.s32.totalorder %s135, %s137
      %p144 = scmp.eq.s32.totalorder %s22, 3
      %p145 = por %p143, %p144
      %p146 = scmp.ne.s32.totalorder %s137, %s138
      %p147 = scmp.eq.s32.totalorder %s22, 0
      %p148 = por %p146, %p147
      %p149 = scmp.ne.s32.totalorder %s137, %s138
      %p150 = scmp.eq.s32.totalorder %s23, 3
      %p151 = por %p149, %p150
      %p153 = scmp.ne.s32.totalorder %s138, %s152
      %p154 = scmp.eq.s32.totalorder %s23, 0
      %p155 = por %p153, %p154
      %s157 = sadd.s32 %s156, 1
      %p160 = scmp.eq.s32.totalorder %s17, 3
      %p161 = scmp.ne.s32.totalorder %s156, %s158
      %p162 = scmp.eq.s32.totalorder %s17, 0
      %p163 = por %p161, %p162
      %p164 = scmp.ne.s32.totalorder %s156, %s158
      %p165 = scmp.eq.s32.totalorder %s22, 3
      %p166 = por %p164, %p165
      %p167 = scmp.ne.s32.totalorder %s158, %s159
      %p168 = scmp.eq.s32.totalorder %s22, 0
      %p169 = por %p167, %p168
      %p170 = scmp.ne.s32.totalorder %s158, %s159
      %p171 = scmp.eq.s32.totalorder %s23, 3
      %p172 = por %p170, %p171
      %p174 = scmp.ne.s32.totalorder %s159, %s173
      %p175 = scmp.eq.s32.totalorder %s23, 0
      %p176 = por %p174, %p175
      %s178 = sadd.s32 %s177, 1
      %p181 = scmp.eq.s32.totalorder %s17, 3
      %p182 = scmp.ne.s32.totalorder %s177, %s179
      %p183 = scmp.eq.s32.totalorder %s17, 0
      %p184 = por %p182, %p183
      %p185 = scmp.ne.s32.totalorder %s177, %s179
      %p186 = scmp.eq.s32.totalorder %s22, 3
      %p187 = por %p185, %p186
      %p188 = scmp.ne.s32.totalorder %s179, %s180
      %p189 = scmp.eq.s32.totalorder %s22, 0
      %p190 = por %p188, %p189
      %p191 = scmp.ne.s32.totalorder %s179, %s180
      %p192 = scmp.eq.s32.totalorder %s23, 3
      %p193 = por %p191, %p192
      %p195 = scmp.ne.s32.totalorder %s180, %s194
      %p196 = scmp.eq.s32.totalorder %s23, 0
      %p197 = por %p195, %p196
      %s198 = sadd.s32 %s24, %s25
      %s199 = sadd.s32 %s36, %s32
      %s200 = ssub.s32 %s198, %s199
      %p201 = scmp.eq.s32.totalorder %s200, 0
      %s203 = sadd.s32 %s202, 1
      %s204 = scalar_select %p201, %s202, %s203
      %p207 = pneg %p201
      %p208 = scmp.eq.s32.totalorder %s17, 3
      %p209 = por %p207, %p208
      %p210 = scmp.ne.s32.totalorder %s202, %s205
      %p211 = scmp.eq.s32.totalorder %s17, 0
      %p212 = por %p210, %p211
      %p213 = scmp.ne.s32.totalorder %s202, %s205
      %p214 = scmp.eq.s32.totalorder %s22, 3
      %p215 = por %p213, %p214
      %p216 = scmp.ne.s32.totalorder %s205, %s206
      %p217 = scmp.eq.s32.totalorder %s22, 0
      %p218 = por %p216, %p217
      %p219 = scmp.ne.s32.totalorder %s205, %s206
      %p220 = scmp.eq.s32.totalorder %s23, 3
      %p221 = por %p219, %p220
      %p223 = scmp.ne.s32.totalorder %s206, %s222
      %p224 = scmp.eq.s32.totalorder %s23, 0
      %p225 = por %p223, %p224
      %s226 = sadd.s32 %s24, %s25
      %s227 = sadd.s32 %s36, %s32
      %s228 = ssub.s32 %s226, %s227
      %p229 = scmp.eq.s32.totalorder %s228, 0
      %s231 = sadd.s32 %s230, 1
      %s232 = scalar_select %p229, %s230, %s231
      %p235 = pneg %p229
      %p236 = scmp.eq.s32.totalorder %s17, 3
      %p237 = por %p235, %p236
      %p238 = scmp.ne.s32.totalorder %s230, %s233
      %p239 = scmp.eq.s32.totalorder %s17, 0
      %p240 = por %p238, %p239
      %p241 = scmp.ne.s32.totalorder %s230, %s233
      %p242 = scmp.eq.s32.totalorder %s22, 3
      %p243 = por %p241, %p242
      %p244 = scmp.ne.s32.totalorder %s233, %s234
      %p245 = scmp.eq.s32.totalorder %s22, 0
      %p246 = por %p244, %p245
      %p247 = scmp.ne.s32.totalorder %s233, %s234
      %p248 = scmp.eq.s32.totalorder %s23, 3
      %p249 = por %p247, %p248
      %p251 = scmp.ne.s32.totalorder %s234, %s250
      %p252 = scmp.eq.s32.totalorder %s23, 0
      %p253 = por %p251, %p252
      %s254 = sadd.s32 %s24, %s25
      %s255 = sadd.s32 %s36, %s32
      %s256 = ssub.s32 %s254, %s255
      %p257 = scmp.eq.s32.totalorder %s256, 0
      %s259 = sadd.s32 %s258, 1
      %s260 = scalar_select %p257, %s258, %s259
      %p263 = pneg %p257
      %p264 = scmp.eq.s32.totalorder %s17, 3
      %p265 = por %p263, %p264
      %p266 = scmp.ne.s32.totalorder %s258, %s261
      %p267 = scmp.eq.s32.totalorder %s17, 0
      %p268 = por %p266, %p267
      %p269 = scmp.ne.s32.totalorder %s258, %s261
      %p270 = scmp.eq.s32.totalorder %s22, 3
      %p271 = por %p269, %p270
      %p272 = scmp.ne.s32.totalorder %s261, %s262
      %p273 = scmp.eq.s32.totalorder %s22, 0
      %p274 = por %p272, %p273
      %p275 = scmp.ne.s32.totalorder %s261, %s262
      %p276 = scmp.eq.s32.totalorder %s23, 3
      %p277 = por %p275, %p276
      %p279 = scmp.ne.s32.totalorder %s262, %s278
      %p280 = scmp.eq.s32.totalorder %s23, 0
      %p281 = por %p279, %p280
      %p282 = scmp.le.s32.totalorder 1, %s17
      %p283 = scmp.lt.s32.totalorder %s17, 5
      %p284 = pnand %p282, %p283
      %p285 = pneg %p284
      // Predicated region
      $region9: #{tpu_custom_call.1} parent=5 // pred_check
        _
      $region10: #{tpu_custom_call.1} parent=5 // pred_check_branch
        %287 = sbr.rel (%p284) target = $region12
      $region11: #{tpu_custom_call.1} parent=5 // pred_region
        %s288 = ssub.s32 %s17, 1
        // Predicated region
        $region13: #{tpu_custom_call.1} parent=11 // pred_check
          %p289 = pneg %p50
        $region14: #{tpu_custom_call.1} parent=11 // pred_check_branch
          %291 = sbr.rel (%p289) target = $region16
        $region15: #{tpu_custom_call.1} parent=11 // pred_region
          %s293 = ssub.s32 64, 64
          %294 = vsyncadd [#allocation3], %s293
          %s296 = sshll.u32 %s0, 4
          %s297 = int_to_ptr.vmem [resolvable:$true] %s296
          %299 = dma.vmem_to_smem %s297, 64, [#allocation2], [#allocation3]
        $region16: #{tpu_custom_call.1} parent=11 // pred_fallthru
          _
        // Predicated region
        $region17: #{tpu_custom_call.1} parent=11 // pred_check
          %p300 = pneg %p127
        $region18: #{tpu_custom_call.1} parent=11 // pred_check_branch
          %302 = sbr.rel (%p300) target = $region20
        $region19: #{tpu_custom_call.1} parent=11 // pred_region
          _
        $region20: #{tpu_custom_call.1} parent=11 // pred_fallthru
          _
        // Predicated region
        $region21: #{tpu_custom_call.1} parent=11 // pred_check
          %p303 = pneg %p148
        $region22: #{tpu_custom_call.1} parent=11 // pred_check_branch
          %305 = sbr.rel (%p303) target = $region24
        $region23: #{tpu_custom_call.1} parent=11 // pred_region
          _
        $region24: #{tpu_custom_call.1} parent=11 // pred_fallthru
          _
        // Predicated region
        $region25: #{tpu_custom_call.1} parent=11 // pred_check
          %p306 = pneg %p169
        $region26: #{tpu_custom_call.1} parent=11 // pred_check_branch
          %308 = sbr.rel (%p306) target = $region28
        $region27: #{tpu_custom_call.1} parent=11 // pred_region
          _
        $region28: #{tpu_custom_call.1} parent=11 // pred_fallthru
          _
        // Predicated region
        $region29: #{tpu_custom_call.1} parent=11 // pred_check
          %p309 = pneg %p190
        $region30: #{tpu_custom_call.1} parent=11 // pred_check_branch
          %311 = sbr.rel (%p309) target = $region32
        $region31: #{tpu_custom_call.1} parent=11 // pred_region
          _
        $region32: #{tpu_custom_call.1} parent=11 // pred_fallthru
          _
      $region12: #{tpu_custom_call.1} parent=5 // pred_fallthru
        _
      %p312 = scmp.lt.s32.totalorder %s17, 4
      // Predicated region
      $region33: #{tpu_custom_call.1} parent=5 // pred_check
        %p313 = pneg %p312
      $region34: #{tpu_custom_call.1} parent=5 // pred_check_branch
        %315 = sbr.rel (%p313) target = $region36
      $region35: #{tpu_custom_call.1} parent=5 // pred_region
        // Predicated region
        $region37: #{tpu_custom_call.1} parent=35 // pred_check
          %p316 = pneg %p72
        $region38: #{tpu_custom_call.1} parent=35 // pred_check_branch
          %318 = sbr.rel (%p316) target = $region40
        $region39: #{tpu_custom_call.1} parent=35 // pred_region
          %s319 = sadd.s32 %s24, %s25
          %s320 = smul.u32 8, %s319
          %p321 = scmp.lt.s32.totalorder %s320, 31
          %s322 = scalar_select %p321, %s320, 31
          %s323 = smul.addr %s322, 8
          %s324 = scalar_lea.vmem %s1, %s323
          %s325 = sadd.s32 %s24, %s25
          %s326 = smul.u32 8, %s325
        $region40: #{tpu_custom_call.1} parent=35 // pred_fallthru
          _
        // Predicated region
        $region41: #{tpu_custom_call.1} parent=35 // pred_check
          %p327 = pneg %p100
        $region42: #{tpu_custom_call.1} parent=35 // pred_check_branch
          %329 = sbr.rel (%p327) target = $region44
        $region43: #{tpu_custom_call.1} parent=35 // pred_region
          %s330 = sadd.s32 %s24, %s25
          %s331 = smul.u32 8, %s330
          %p332 = scmp.lt.s32.totalorder %s331, 31
          %s333 = scalar_select %p332, %s331, 31
          %s334 = smul.addr %s333, 8
          %s335 = scalar_lea.vmem %s2, %s334
          %s336 = sadd.s32 %s24, %s25
          %s337 = smul.u32 8, %s336
        $region44: #{tpu_custom_call.1} parent=35 // pred_fallthru
          _
      $region36: #{tpu_custom_call.1} parent=5 // pred_fallthru
        _
      %p338 = scmp.le.s32.totalorder 1, %s17
      %p339 = scmp.lt.s32.totalorder %s17, 5
      %p340 = pnand %p338, %p339
      %p341 = pneg %p340
      // Predicated region
      $region45: #{tpu_custom_call.1} parent=5 // pred_check
        _
      $region46: #{tpu_custom_call.1} parent=5 // pred_check_branch
        %343 = sbr.rel (%p340) target = $region48
      $region47: #{tpu_custom_call.1} parent=5 // pred_region
        %s344 = ssub.s32 %s17, 1
        // Predicated region
        $region49: #{tpu_custom_call.1} parent=47 // pred_check
          %p345 = pneg %p50
        $region50: #{tpu_custom_call.1} parent=47 // pred_check_branch
          %347 = sbr.rel (%p345) target = $region52
        $region51: #{tpu_custom_call.1} parent=47 // pred_region
          %348 = dma.done [#allocation3], 64
        $region52: #{tpu_custom_call.1} parent=47 // pred_fallthru
          _
        %349 = sfence
        %p350 = pneg %p50
        %p351 = pneg %p47
        %s352 = sadd.s32 %s26, %s27
        %s353 = smul.u32 8, %s352
        %p354 = scmp.lt.s32.totalorder %s353, 31
        %s355 = scalar_select %p354, %s353, 31
        %s356 = smul.addr %s355, 8
        %s357 = scalar_lea.vmem %s1, %s356
        %p358 = pneg %p78
        %p359 = pneg %p75
        %s360 = sadd.s32 %s26, %s27
        %s361 = smul.u32 8, %s360
        %p362 = scmp.lt.s32.totalorder %s361, 31
        %s363 = scalar_select %p362, %s361, 31
        %s364 = smul.addr %s363, 8
        %s365 = scalar_lea.vmem %s2, %s364
        %p366 = pneg %p106
        %p367 = pneg %p103
        %p368 = pneg %p127
        %p369 = pneg %p124
        %p370 = pneg %p148
        %p371 = pneg %p145
        %p372 = pneg %p169
        %p373 = pneg %p166
        %p374 = pneg %p190
        %p375 = pneg %p187
        %p376 = pneg %p218
        %p377 = pneg %p215
        %s378 = sadd.s32 %s26, %s27
        %s379 = smul.u32 8, %s378
        %p380 = scmp.lt.s32.totalorder %s379, 31
        %s381 = scalar_select %p380, %s379, 31
        %s382 = smul.addr %s381, 8
        %s383 = scalar_lea.vmem %s7, %s382
        %p384 = pneg %p246
        %p385 = pneg %p243
        %s386 = sadd.s32 %s26, %s27
        %s387 = smul.u32 8, %s386
        %p388 = scmp.lt.s32.totalorder %s387, 31
        %s389 = scalar_select %p388, %s387, 31
        %s390 = smul.addr %s389, 4
        %s391 = scalar_lea.vmem %s8, %s390
        %p392 = pneg %p274
        %p393 = pneg %p271
        %s394 = sadd.s32 %s26, %s27
        %s395 = smul.u32 8, %s394
        %p396 = scmp.lt.s32.totalorder %s395, 31
        %s397 = scalar_select %p396, %s395, 31
        %s398 = smul.addr %s397, 8
        %s399 = scalar_lea.vmem %s9, %s398
        %s400 = sadd.s32 %s26, %s27
        %s401 = smul.u32 8, %s400
        %p402 = scmp.lt.s32.totalorder %s401, 31
        %s403 = scalar_select %p402, %s401, 31
        %s404 = smul.addr %s403, 8
        %s405 = scalar_lea.vmem %s1, %s404
        %s406 = sadd.s32 %s26, %s27
        %s407 = smul.u32 8, %s406
        %s408 = sadd.s32 %s26, %s27
        %s409 = smul.u32 8, %s408
        %p410 = scmp.lt.s32.totalorder %s409, 31
        %s411 = scalar_select %p410, %s409, 31
        %s412 = smul.addr %s411, 8
        %s413 = scalar_lea.vmem %s2, %s412
        %s414 = sadd.s32 %s26, %s27
        %s415 = smul.u32 8, %s414
        %s416 = sadd.s32 %s26, %s27
        %s417 = smul.u32 8, %s416
        %p418 = scmp.lt.s32.totalorder %s417, 31
        %s419 = scalar_select %p418, %s417, 31
        %s420 = smul.addr %s419, 8
        %s421 = scalar_lea.vmem %s7, %s420
        %s422 = sadd.s32 %s26, %s27
        %s423 = smul.u32 8, %s422
        %s424 = sadd.s32 %s26, %s27
        %s425 = smul.u32 8, %s424
        %p426 = scmp.lt.s32.totalorder %s425, 31
        %s427 = scalar_select %p426, %s425, 31
        %s428 = smul.addr %s427, 4
        %s429 = scalar_lea.vmem %s8, %s428
        %s430 = sadd.s32 %s26, %s27
        %s431 = smul.u32 8, %s430
        %s432 = sadd.s32 %s26, %s27
        %s433 = smul.u32 8, %s432
        %p434 = scmp.lt.s32.totalorder %s433, 31
        %s435 = scalar_select %p434, %s433, 31
        %s436 = smul.addr %s435, 8
        %s437 = scalar_lea.vmem %s9, %s436
        %s438 = sadd.s32 %s26, %s27
        %s439 = smul.u32 8, %s438
        %v441 = vld [vmem:[%s413] sm:$0xff]
        %v442 = vld [vmem:[%s413 + $0x8] sm:$0xff]
        %v443 = vld [vmem:[%s413 + $0x10] sm:$0xff]
        %v444 = vld [vmem:[%s413 + $0x18] sm:$0xff]
        %v445 = vld [vmem:[%s413 + $0x20] sm:$0xff]
        %v446 = vld [vmem:[%s413 + $0x28] sm:$0xff]
        %v447 = vld [vmem:[%s413 + $0x30] sm:$0xff]
        %v448 = vld [vmem:[%s413 + $0x38] sm:$0xff]
        %s449 = smul.u32 %s27, 64
        %v450 = vlaneseq
        %v451 = vshrl.u32 %v450, 7
        %v452 = vadd.s32 %v451, 8
        %v453 = vadd.s32 %v451, 16
        %v454 = vadd.s32 %v451, 24
        %v455 = vadd.s32 %v451, 32
        %v456 = vadd.s32 %v451, 40
        %v457 = vadd.s32 %v451, 48
        %v458 = vadd.s32 %v451, 56
        %v459 = vstv %s449
        %v460 = vadd.s32 %v459, %v451
        %v461 = vadd.s32 %v459, %v452
        %v462 = vadd.s32 %v459, %v453
        %v463 = vadd.s32 %v459, %v454
        %v464 = vadd.s32 %v459, %v455
        %v465 = vadd.s32 %v459, %v456
        %v466 = vadd.s32 %v459, %v457
        %v467 = vadd.s32 %v459, %v458
        %v468 = vcvt.s32.f32 %v460
        %v469 = vcvt.s32.f32 %v461
        %v470 = vcvt.s32.f32 %v462
        %v471 = vcvt.s32.f32 %v463
        %v472 = vcvt.s32.f32 %v464
        %v473 = vcvt.s32.f32 %v465
        %v474 = vcvt.s32.f32 %v466
        %v475 = vcvt.s32.f32 %v467
        %v476 = vadd.f32 %v468, 0.5
        %v477 = vadd.f32 %v469, 0.5
        %v478 = vadd.f32 %v470, 0.5
        %v479 = vadd.f32 %v471, 0.5
        %v480 = vadd.f32 %v472, 0.5
        %v481 = vadd.f32 %v473, 0.5
        %v482 = vadd.f32 %v474, 0.5
        %v483 = vadd.f32 %v475, 0.5
        %v484 = vmul.f32 %v476, 0.125
        %v485 = vmul.f32 %v477, 0.125
        %v486 = vmul.f32 %v478, 0.125
        %v487 = vmul.f32 %v479, 0.125
        %v488 = vmul.f32 %v480, 0.125
        %v489 = vmul.f32 %v481, 0.125
        %v490 = vmul.f32 %v482, 0.125
        %v491 = vmul.f32 %v483, 0.125
        %v492 = vfloor.f32 %v484
        %v493 = vfloor.f32 %v485
        %v494 = vfloor.f32 %v486
        %v495 = vfloor.f32 %v487
        %v496 = vfloor.f32 %v488
        %v497 = vfloor.f32 %v489
        %v498 = vfloor.f32 %v490
        %v499 = vfloor.f32 %v491
        %v500 = vmul.f32 %v492, 8.0
        %v501 = vmul.f32 %v493, 8.0
        %v502 = vmul.f32 %v494, 8.0
        %v503 = vmul.f32 %v495, 8.0
        %v504 = vmul.f32 %v496, 8.0
        %v505 = vmul.f32 %v497, 8.0
        %v506 = vmul.f32 %v498, 8.0
        %v507 = vmul.f32 %v499, 8.0
        %v508 = vsub.f32 %v468, %v500
        %v509 = vsub.f32 %v469, %v501
        %v510 = vsub.f32 %v470, %v502
        %v511 = vsub.f32 %v471, %v503
        %v512 = vsub.f32 %v472, %v504
        %v513 = vsub.f32 %v473, %v505
        %v514 = vsub.f32 %v474, %v506
        %v515 = vsub.f32 %v475, %v507
        %v516 = vmul.f32 %v508, %v441
        %v517 = vmul.f32 %v509, %v442
        %v518 = vmul.f32 %v510, %v443
        %v519 = vmul.f32 %v511, %v444
        %v520 = vmul.f32 %v512, %v445
        %v521 = vmul.f32 %v513, %v446
        %v522 = vmul.f32 %v514, %v447
        %v523 = vmul.f32 %v515, %v448
        %v524 = vmul.f32 %v492, %v441
        %v525 = vmul.f32 %v493, %v442
        %v526 = vmul.f32 %v494, %v443
        %v527 = vmul.f32 %v495, %v444
        %v528 = vmul.f32 %v496, %v445
        %v529 = vmul.f32 %v497, %v446
        %v530 = vmul.f32 %v498, %v447
        %v531 = vmul.f32 %v499, %v448
        %s532 = smul.u32 %s26, 128
        %s533 = sld [smem:[#allocation2 + %s532]]
        %v534 = vstv %s533
        %v535 = vmul.f32 %v534, %v516
        %v536 = vmul.f32 %v534, %v517
        %v537 = vmul.f32 %v534, %v518
        %v538 = vmul.f32 %v534, %v519
        %v539 = vmul.f32 %v534, %v520
        %v540 = vmul.f32 %v534, %v521
        %v541 = vmul.f32 %v534, %v522
        %v542 = vmul.f32 %v534, %v523
        %s543 = sadd.s32 %s532, 1
        %s544 = sld [smem:[#allocation2 + %s543]]
        %v545 = vstv %s544
        %v546 = vmul.f32 %v545, %v524
        %v547 = vmul.f32 %v545, %v525
        %v548 = vmul.f32 %v545, %v526
        %v549 = vmul.f32 %v545, %v527
        %v550 = vmul.f32 %v545, %v528
        %v551 = vmul.f32 %v545, %v529
        %v552 = vmul.f32 %v545, %v530
        %v553 = vmul.f32 %v545, %v531
        %v554 = vadd.f32 %v535, %v546
        %v555 = vadd.f32 %v536, %v547
        %v556 = vadd.f32 %v537, %v548
        %v557 = vadd.f32 %v538, %v549
        %v558 = vadd.f32 %v539, %v550
        %v559 = vadd.f32 %v540, %v551
        %v560 = vadd.f32 %v541, %v552
        %v561 = vadd.f32 %v542, %v553
        %s562 = sadd.s32 %s532, 2
        %s563 = sld [smem:[#allocation2 + %s562]]
        %v564 = vstv %s563
        %v565 = vmul.f32 %v564, %v441
        %v566 = vmul.f32 %v564, %v442
        %v567 = vmul.f32 %v564, %v443
        %v568 = vmul.f32 %v564, %v444
        %v569 = vmul.f32 %v564, %v445
        %v570 = vmul.f32 %v564, %v446
        %v571 = vmul.f32 %v564, %v447
        %v572 = vmul.f32 %v564, %v448
        %v573 = vadd.f32 %v554, %v565
        %v574 = vadd.f32 %v555, %v566
        %v575 = vadd.f32 %v556, %v567
        %v576 = vadd.f32 %v557, %v568
        %v577 = vadd.f32 %v558, %v569
        %v578 = vadd.f32 %v559, %v570
        %v579 = vadd.f32 %v560, %v571
        %v580 = vadd.f32 %v561, %v572
        %s581 = sadd.s32 %s532, 3
        %s582 = sld [smem:[#allocation2 + %s581]]
        %v583 = vstv %s582
        %v584 = vadd.f32 %v573, %v583
        %v585 = vadd.f32 %v574, %v583
        %v586 = vadd.f32 %v575, %v583
        %v587 = vadd.f32 %v576, %v583
        %v588 = vadd.f32 %v577, %v583
        %v589 = vadd.f32 %v578, %v583
        %v590 = vadd.f32 %v579, %v583
        %v591 = vadd.f32 %v580, %v583
        %s592 = sadd.s32 %s532, 4
        %s593 = sld [smem:[#allocation2 + %s592]]
        %v594 = vstv %s593
        %v595 = vmul.f32 %v594, %v516
        %v596 = vmul.f32 %v594, %v517
        %v597 = vmul.f32 %v594, %v518
        %v598 = vmul.f32 %v594, %v519
        %v599 = vmul.f32 %v594, %v520
        %v600 = vmul.f32 %v594, %v521
        %v601 = vmul.f32 %v594, %v522
        %v602 = vmul.f32 %v594, %v523
        %s603 = sadd.s32 %s532, 5
        %s604 = sld [smem:[#allocation2 + %s603]]
        %v605 = vstv %s604
        %v606 = vmul.f32 %v605, %v524
        %v607 = vmul.f32 %v605, %v525
        %v608 = vmul.f32 %v605, %v526
        %v609 = vmul.f32 %v605, %v527
        %v610 = vmul.f32 %v605, %v528
        %v611 = vmul.f32 %v605, %v529
        %v612 = vmul.f32 %v605, %v530
        %v613 = vmul.f32 %v605, %v531
        %v614 = vadd.f32 %v595, %v606
        %v615 = vadd.f32 %v596, %v607
        %v616 = vadd.f32 %v597, %v608
        %v617 = vadd.f32 %v598, %v609
        %v618 = vadd.f32 %v599, %v610
        %v619 = vadd.f32 %v600, %v611
        %v620 = vadd.f32 %v601, %v612
        %v621 = vadd.f32 %v602, %v613
        %s622 = sadd.s32 %s532, 6
        %s623 = sld [smem:[#allocation2 + %s622]]
        %v624 = vstv %s623
        %v625 = vmul.f32 %v624, %v441
        %v626 = vmul.f32 %v624, %v442
        %v627 = vmul.f32 %v624, %v443
        %v628 = vmul.f32 %v624, %v444
        %v629 = vmul.f32 %v624, %v445
        %v630 = vmul.f32 %v624, %v446
        %v631 = vmul.f32 %v624, %v447
        %v632 = vmul.f32 %v624, %v448
        %v633 = vadd.f32 %v614, %v625
        %v634 = vadd.f32 %v615, %v626
        %v635 = vadd.f32 %v616, %v627
        %v636 = vadd.f32 %v617, %v628
        %v637 = vadd.f32 %v618, %v629
        %v638 = vadd.f32 %v619, %v630
        %v639 = vadd.f32 %v620, %v631
        %v640 = vadd.f32 %v621, %v632
        %s641 = sadd.s32 %s532, 7
        %s642 = sld [smem:[#allocation2 + %s641]]
        %v643 = vstv %s642
        %v644 = vadd.f32 %v633, %v643
        %v645 = vadd.f32 %v634, %v643
        %v646 = vadd.f32 %v635, %v643
        %v647 = vadd.f32 %v636, %v643
        %v648 = vadd.f32 %v637, %v643
        %v649 = vadd.f32 %v638, %v643
        %v650 = vadd.f32 %v639, %v643
        %v651 = vadd.f32 %v640, %v643
        %s652 = sadd.s32 %s532, 8
        %s653 = sld [smem:[#allocation2 + %s652]]
        %v654 = vstv %s653
        %v655 = vmul.f32 %v654, %v516
        %v656 = vmul.f32 %v654, %v517
        %v657 = vmul.f32 %v654, %v518
        %v658 = vmul.f32 %v654, %v519
        %v659 = vmul.f32 %v654, %v520
        %v660 = vmul.f32 %v654, %v521
        %v661 = vmul.f32 %v654, %v522
        %v662 = vmul.f32 %v654, %v523
        %s663 = sadd.s32 %s532, 9
        %s664 = sld [smem:[#allocation2 + %s663]]
        %v665 = vstv %s664
        %v666 = vmul.f32 %v665, %v524
        %v667 = vmul.f32 %v665, %v525
        %v668 = vmul.f32 %v665, %v526
        %v669 = vmul.f32 %v665, %v527
        %v670 = vmul.f32 %v665, %v528
        %v671 = vmul.f32 %v665, %v529
        %v672 = vmul.f32 %v665, %v530
        %v673 = vmul.f32 %v665, %v531
        %v674 = vadd.f32 %v655, %v666
        %v675 = vadd.f32 %v656, %v667
        %v676 = vadd.f32 %v657, %v668
        %v677 = vadd.f32 %v658, %v669
        %v678 = vadd.f32 %v659, %v670
        %v679 = vadd.f32 %v660, %v671
        %v680 = vadd.f32 %v661, %v672
        %v681 = vadd.f32 %v662, %v673
        %s682 = sadd.s32 %s532, 10
        %s683 = sld [smem:[#allocation2 + %s682]]
        %v684 = vstv %s683
        %v685 = vmul.f32 %v684, %v441
        %v686 = vmul.f32 %v684, %v442
        %v687 = vmul.f32 %v684, %v443
        %v688 = vmul.f32 %v684, %v444
        %v689 = vmul.f32 %v684, %v445
        %v690 = vmul.f32 %v684, %v446
        %v691 = vmul.f32 %v684, %v447
        %v692 = vmul.f32 %v684, %v448
        %v693 = vadd.f32 %v674, %v685
        %v694 = vadd.f32 %v675, %v686
        %v695 = vadd.f32 %v676, %v687
        %v696 = vadd.f32 %v677, %v688
        %v697 = vadd.f32 %v678, %v689
        %v698 = vadd.f32 %v679, %v690
        %v699 = vadd.f32 %v680, %v691
        %v700 = vadd.f32 %v681, %v692
        %s701 = sadd.s32 %s532, 11
        %s702 = sld [smem:[#allocation2 + %s701]]
        %v703 = vstv %s702
        %v704 = vadd.f32 %v693, %v703
        %v705 = vadd.f32 %v694, %v703
        %v706 = vadd.f32 %v695, %v703
        %v707 = vadd.f32 %v696, %v703
        %v708 = vadd.f32 %v697, %v703
        %v709 = vadd.f32 %v698, %v703
        %v710 = vadd.f32 %v699, %v703
        %v711 = vadd.f32 %v700, %v703
        %vm712 = vcmask 7168
        %713 = vst.msk [vmem:[%s437] sm:$0xff] %vm712, %v584
        %714 = vst.msk [vmem:[%s437 + $0x8] sm:$0xff] %vm712, %v585
        %715 = vst.msk [vmem:[%s437 + $0x10] sm:$0xff] %vm712, %v586
        %716 = vst.msk [vmem:[%s437 + $0x18] sm:$0xff] %vm712, %v587
        %717 = vst.msk [vmem:[%s437 + $0x20] sm:$0xff] %vm712, %v588
        %718 = vst.msk [vmem:[%s437 + $0x28] sm:$0xff] %vm712, %v589
        %719 = vst.msk [vmem:[%s437 + $0x30] sm:$0xff] %vm712, %v590
        %720 = vst.msk [vmem:[%s437 + $0x38] sm:$0xff] %vm712, %v591
        %729 = vrot.lane.b32.xlu0 %v644, 1
        %v730 = vpop.permute.xlu0 %729
        %731 = vrot.lane.b32.xlu0 %v645, 1
        %v732 = vpop.permute.xlu0 %731
        %733 = vrot.lane.b32.xlu0 %v646, 1
        %v734 = vpop.permute.xlu0 %733
        %735 = vrot.lane.b32.xlu0 %v647, 1
        %v736 = vpop.permute.xlu0 %735
        %737 = vrot.lane.b32.xlu0 %v648, 1
        %v738 = vpop.permute.xlu0 %737
        %739 = vrot.lane.b32.xlu0 %v649, 1
        %v740 = vpop.permute.xlu0 %739
        %741 = vrot.lane.b32.xlu0 %v650, 1
        %v742 = vpop.permute.xlu0 %741
        %743 = vrot.lane.b32.xlu0 %v651, 1
        %v744 = vpop.permute.xlu0 %743
        %vm753 = vcmask 15368
        %754 = vst.msk [vmem:[%s437] sm:$0xff] %vm753, %v730
        %755 = vst.msk [vmem:[%s437 + $0x8] sm:$0xff] %vm753, %v732
        %756 = vst.msk [vmem:[%s437 + $0x10] sm:$0xff] %vm753, %v734
        %757 = vst.msk [vmem:[%s437 + $0x18] sm:$0xff] %vm753, %v736
        %758 = vst.msk [vmem:[%s437 + $0x20] sm:$0xff] %vm753, %v738
        %759 = vst.msk [vmem:[%s437 + $0x28] sm:$0xff] %vm753, %v740
        %760 = vst.msk [vmem:[%s437 + $0x30] sm:$0xff] %vm753, %v742
        %761 = vst.msk [vmem:[%s437 + $0x38] sm:$0xff] %vm753, %v744
        %770 = vrot.lane.b32.xlu0 %v704, 2
        %v771 = vpop.permute.xlu0 %770
        %772 = vrot.lane.b32.xlu0 %v705, 2
        %v773 = vpop.permute.xlu0 %772
        %774 = vrot.lane.b32.xlu0 %v706, 2
        %v775 = vpop.permute.xlu0 %774
        %776 = vrot.lane.b32.xlu0 %v707, 2
        %v777 = vpop.permute.xlu0 %776
        %778 = vrot.lane.b32.xlu0 %v708, 2
        %v779 = vpop.permute.xlu0 %778
        %780 = vrot.lane.b32.xlu0 %v709, 2
        %v781 = vpop.permute.xlu0 %780
        %782 = vrot.lane.b32.xlu0 %v710, 2
        %v783 = vpop.permute.xlu0 %782
        %784 = vrot.lane.b32.xlu0 %v711, 2
        %v785 = vpop.permute.xlu0 %784
        %vm794 = vcmask 23568
        %795 = vst.msk [vmem:[%s437] sm:$0xff] %vm794, %v771
        %796 = vst.msk [vmem:[%s437 + $0x8] sm:$0xff] %vm794, %v773
        %797 = vst.msk [vmem:[%s437 + $0x10] sm:$0xff] %vm794, %v775
        %798 = vst.msk [vmem:[%s437 + $0x18] sm:$0xff] %vm794, %v777
        %799 = vst.msk [vmem:[%s437 + $0x20] sm:$0xff] %vm794, %v779
        %800 = vst.msk [vmem:[%s437 + $0x28] sm:$0xff] %vm794, %v781
        %801 = vst.msk [vmem:[%s437 + $0x30] sm:$0xff] %vm794, %v783
        %802 = vst.msk [vmem:[%s437 + $0x38] sm:$0xff] %vm794, %v785
        %v803 = vld [vmem:[%s3] sm:$0x1]
        %805 = vset.pattern.permute.xlu0 0
        %806 = vperm.xlu0 %805, %v584
        %v807 = vpop.permute.xlu0 %806
        %810 = vset.pattern.permute.xlu0 0
        %811 = vperm.xlu0 %810, %v585
        %v812 = vpop.permute.xlu0 %811
        %815 = vset.pattern.permute.xlu0 0
        %816 = vperm.xlu0 %815, %v586
        %v817 = vpop.permute.xlu0 %816
        %820 = vset.pattern.permute.xlu0 0
        %821 = vperm.xlu0 %820, %v587
        %v822 = vpop.permute.xlu0 %821
        %825 = vset.pattern.permute.xlu0 0
        %826 = vperm.xlu0 %825, %v588
        %v827 = vpop.permute.xlu0 %826
        %830 = vset.pattern.permute.xlu0 0
        %831 = vperm.xlu0 %830, %v589
        %v832 = vpop.permute.xlu0 %831
        %835 = vset.pattern.permute.xlu0 0
        %836 = vperm.xlu0 %835, %v590
        %v837 = vpop.permute.xlu0 %836
        %840 = vset.pattern.permute.xlu0 0
        %841 = vperm.xlu0 %840, %v591
        %v842 = vpop.permute.xlu0 %841
        %v844 = vlaneseq
        %v845 = vshrl.u32 %v844, 7
        %v846 = vsub.s32 0, %v845
        %v847 = vrot.slane %v803, %v846
        %v848 = vmul.f32 %v807, %v847
        %v849 = vmul.f32 %v812, %v847
        %v850 = vmul.f32 %v817, %v847
        %v851 = vmul.f32 %v822, %v847
        %v852 = vmul.f32 %v827, %v847
        %v853 = vmul.f32 %v832, %v847
        %v854 = vmul.f32 %v837, %v847
        %v855 = vmul.f32 %v842, %v847
        %v856 = vld [vmem:[%s3 + $0x1] sm:$0x1]
        %857 = vset.pattern.permute.xlu0 0
        %858 = vperm.xlu0 %857, %v644
        %v859 = vpop.permute.xlu0 %858
        %861 = vset.pattern.permute.xlu0 0
        %862 = vperm.xlu0 %861, %v645
        %v863 = vpop.permute.xlu0 %862
        %865 = vset.pattern.permute.xlu0 0
        %866 = vperm.xlu0 %865, %v646
        %v867 = vpop.permute.xlu0 %866
        %869 = vset.pattern.permute.xlu0 0
        %870 = vperm.xlu0 %869, %v647
        %v871 = vpop.permute.xlu0 %870
        %873 = vset.pattern.permute.xlu0 0
        %874 = vperm.xlu0 %873, %v648
        %v875 = vpop.permute.xlu0 %874
        %877 = vset.pattern.permute.xlu0 0
        %878 = vperm.xlu0 %877, %v649
        %v879 = vpop.permute.xlu0 %878
        %881 = vset.pattern.permute.xlu0 0
        %882 = vperm.xlu0 %881, %v650
        %v883 = vpop.permute.xlu0 %882
        %885 = vset.pattern.permute.xlu0 0
        %886 = vperm.xlu0 %885, %v651
        %v887 = vpop.permute.xlu0 %886
        %v889 = vlaneseq
        %v890 = vshrl.u32 %v889, 7
        %v891 = vsub.s32 0, %v890
        %v892 = vrot.slane %v856, %v891
        %v893 = vmul.f32 %v859, %v892
        %v894 = vmul.f32 %v863, %v892
        %v895 = vmul.f32 %v867, %v892
        %v896 = vmul.f32 %v871, %v892
        %v897 = vmul.f32 %v875, %v892
        %v898 = vmul.f32 %v879, %v892
        %v899 = vmul.f32 %v883, %v892
        %v900 = vmul.f32 %v887, %v892
        %v901 = vadd.f32 %v848, %v893
        %v902 = vadd.f32 %v849, %v894
        %v903 = vadd.f32 %v850, %v895
        %v904 = vadd.f32 %v851, %v896
        %v905 = vadd.f32 %v852, %v897
        %v906 = vadd.f32 %v853, %v898
        %v907 = vadd.f32 %v854, %v899
        %v908 = vadd.f32 %v855, %v900
        %v909 = vld [vmem:[%s3 + $0x2] sm:$0x1]
        %910 = vset.pattern.permute.xlu0 0
        %911 = vperm.xlu0 %910, %v704
        %v912 = vpop.permute.xlu0 %911
        %914 = vset.pattern.permute.xlu0 0
        %915 = vperm.xlu0 %914, %v705
        %v916 = vpop.permute.xlu0 %915
        %918 = vset.pattern.permute.xlu0 0
        %919 = vperm.xlu0 %918, %v706
        %v920 = vpop.permute.xlu0 %919
        %922 = vset.pattern.permute.xlu0 0
        %923 = vperm.xlu0 %922, %v707
        %v924 = vpop.permute.xlu0 %923
        %926 = vset.pattern.permute.xlu0 0
        %927 = vperm.xlu0 %926, %v708
        %v928 = vpop.permute.xlu0 %927
        %930 = vset.pattern.permute.xlu0 0
        %931 = vperm.xlu0 %930, %v709
        %v932 = vpop.permute.xlu0 %931
        %934 = vset.pattern.permute.xlu0 0
        %935 = vperm.xlu0 %934, %v710
        %v936 = vpop.permute.xlu0 %935
        %938 = vset.pattern.permute.xlu0 0
        %939 = vperm.xlu0 %938, %v711
        %v940 = vpop.permute.xlu0 %939
        %v942 = vlaneseq
        %v943 = vshrl.u32 %v942, 7
        %v944 = vsub.s32 0, %v943
        %v945 = vrot.slane %v909, %v944
        %v946 = vmul.f32 %v912, %v945
        %v947 = vmul.f32 %v916, %v945
        %v948 = vmul.f32 %v920, %v945
        %v949 = vmul.f32 %v924, %v945
        %v950 = vmul.f32 %v928, %v945
        %v951 = vmul.f32 %v932, %v945
        %v952 = vmul.f32 %v936, %v945
        %v953 = vmul.f32 %v940, %v945
        %v954 = vadd.f32 %v901, %v946
        %v955 = vadd.f32 %v902, %v947
        %v956 = vadd.f32 %v903, %v948
        %v957 = vadd.f32 %v904, %v949
        %v958 = vadd.f32 %v905, %v950
        %v959 = vadd.f32 %v906, %v951
        %v960 = vadd.f32 %v907, %v952
        %v961 = vadd.f32 %v908, %v953
        %v962 = vld [vmem:[%s4] sm:$0x1]
        %v964 = vlaneseq
        %v965 = vshrl.u32 %v964, 7
        %v966 = vsub.s32 0, %v965
        %v967 = vrot.slane %v962, %v966
        %v969 = vadd.f32 %v954, %v967
        %v970 = vadd.f32 %v955, %v967
        %v971 = vadd.f32 %v956, %v967
        %v972 = vadd.f32 %v957, %v967
        %v973 = vadd.f32 %v958, %v967
        %v974 = vadd.f32 %v959, %v967
        %v975 = vadd.f32 %v960, %v967
        %v976 = vadd.f32 %v961, %v967
        %v977 = vmax.f32 %v969, 0.0
        %v978 = vmax.f32 %v970, 0.0
        %v979 = vmax.f32 %v971, 0.0
        %v980 = vmax.f32 %v972, 0.0
        %v981 = vmax.f32 %v973, 0.0
        %v982 = vmax.f32 %v974, 0.0
        %v983 = vmax.f32 %v975, 0.0
        %v984 = vmax.f32 %v976, 0.0
        %v985 = vpack.c.bf16 %v978, %v977
        %v986 = vpack.c.bf16 %v980, %v979
        %v987 = vpack.c.bf16 %v982, %v981
        %v988 = vpack.c.bf16 %v984, %v983
        %v989 = vld [vmem:[%s5] sm:$0xf]
        %v990 = vld [vmem:[%s5 + $0x4] sm:$0xf]
        %v991 = vld [vmem:[%s5 + $0x8] sm:$0xf]
        %v992 = vld [vmem:[%s5 + $0xc] sm:$0xf]
        %v993 = vld [vmem:[%s5 + $0x10] sm:$0xf]
        %v994 = vld [vmem:[%s5 + $0x14] sm:$0xf]
        %v995 = vld [vmem:[%s5 + $0x18] sm:$0xf]
        %v996 = vld [vmem:[%s5 + $0x1c] sm:$0xf]
        %v997 = vld [vmem:[%s6] sm:$0x1]
        %v999 = vlaneseq
        %v1000 = vshrl.u32 %v999, 7
        %v1001 = vsub.s32 0, %v1000
        %v1002 = vrot.slane %v997, %v1001
        %v1012 = vunpack.c.l.b16 %v989
        %v1013 = vunpack.c.l.b16 %v990
        %v1014 = vunpack.c.l.b16 %v991
        %v1015 = vunpack.c.l.b16 %v992
        %v1016 = vunpack.c.l.b16 %v993
        %v1017 = vunpack.c.l.b16 %v994
        %v1018 = vunpack.c.l.b16 %v995
        %v1019 = vunpack.c.l.b16 %v996
        %v1020 = vpack.c.b16 %v1013, %v1012
        %v1021 = vpack.c.b16 %v1015, %v1014
        %v1022 = vpack.c.b16 %v1017, %v1016
        %v1023 = vpack.c.b16 %v1019, %v1018
        %vm1028 = vcmask 523264
        %v1030 = vsel %vm1028, %v985, 0
        %v1033 = vsel %vm1028, %v986, 0
        %v1036 = vsel %vm1028, %v987, 0
        %v1039 = vsel %vm1028, %v988, 0
        %1041 = vmatprep.subr.bf16.mxu0 0
        %1042 = vmatpush1.bf16.msra.mxu0 %v1020
        %1043 = vmatprep.subr.bf16.mxu0 0
        %1044 = vmatpush1.bf16.msra.mxu0 %v1021
        %1045 = vmatprep.subr.bf16.mxu0 0
        %1046 = vmatpush1.bf16.msra.mxu0 %v1022
        %1047 = vmatprep.subr.bf16.mxu0 0
        %1048 = vmatpush1.bf16.msra.mxu0 %v1023
        %1049 = vmatprep.subr.bf16.mxu0 0
        %1050 = vmatpush1.bf16.msra.mxu0 0
        %1051 = vmatprep.subr.bf16.mxu0 0
        %1052 = vmatpush1.bf16.msra.mxu0 0
        %1053 = vmatprep.subr.bf16.mxu0 0
        %1054 = vmatpush1.bf16.msra.mxu0 0
        %1055 = vmatprep.subr.bf16.mxu0 0
        %1056 = vmatpush1.bf16.msra.mxu0 0
        %1057 = vmatprep.subr.bf16.mxu0 0
        %1058 = vmatpush1.bf16.msra.mxu0 0
        %1059 = vmatprep.subr.bf16.mxu0 0
        %1060 = vmatpush1.bf16.msra.mxu0 0
        %1061 = vmatprep.subr.bf16.mxu0 0
        %1062 = vmatpush1.bf16.msra.mxu0 0
        %1063 = vmatprep.subr.bf16.mxu0 0
        %1064 = vmatpush1.bf16.msra.mxu0 0
        %1065 = vmatprep.subr.bf16.mxu0 0
        %1066 = vmatpush1.bf16.msra.mxu0 0
        %1067 = vmatprep.subr.bf16.mxu0 0
        %1068 = vmatpush1.bf16.msra.mxu0 0
        %1069 = vmatprep.subr.bf16.mxu0 0
        %1070 = vmatpush1.bf16.msra.mxu0 0
        %1071 = vmatprep.subr.bf16.mxu0 0
        %1072 = vmatpush1.bf16.msra.mxu0 0
        %1073 = vmatprep.mubr.bf16.mxu0 0
        %1074 = vmatmul.mubr.bf16.gmra.mrb[0].mxu0 %v1030
        %v1075 = vpop.f32.mrb[0].mxu0
        %v1076 = vadd.f32 %v1002, %v1075
        %v1077 = vpop.f32.mrb[0].mxu0
        %v1078 = vpop.f32.mrb[0].mxu0
        %v1079 = vadd.f32 %v1002, %v1078
        %v1080 = vpop.f32.mrb[0].mxu0
        %1081 = vmatprep.mubr.bf16.mxu0 0
        %1082 = vmatmul.mubr.bf16.gmra.mrb[0].mxu0 %v1033
        %v1083 = vpop.f32.mrb[0].mxu0
        %v1084 = vadd.f32 %v1002, %v1083
        %v1085 = vpop.f32.mrb[0].mxu0
        %v1086 = vpop.f32.mrb[0].mxu0
        %v1087 = vadd.f32 %v1002, %v1086
        %v1088 = vpop.f32.mrb[0].mxu0
        %1089 = vmatprep.mubr.bf16.mxu0 0
        %1090 = vmatmul.mubr.bf16.gmra.mrb[0].mxu0 %v1036
        %v1091 = vpop.f32.mrb[0].mxu0
        %v1092 = vadd.f32 %v1002, %v1091
        %v1093 = vpop.f32.mrb[0].mxu0
        %v1094 = vpop.f32.mrb[0].mxu0
        %v1095 = vadd.f32 %v1002, %v1094
        %v1096 = vpop.f32.mrb[0].mxu0
        %1097 = vmatprep.mubr.bf16.mxu0 0
        %1098 = vmatmul.mubr.bf16.gmra.mrb[0].mxu0 %v1039
        %v1099 = vpop.f32.mrb[0].mxu0
        %v1100 = vadd.f32 %v1002, %v1099
        %v1101 = vpop.f32.mrb[0].mxu0
        %v1102 = vpop.f32.mrb[0].mxu0
        %v1103 = vadd.f32 %v1002, %v1102
        %v1104 = vpop.f32.mrb[0].mxu0
        %1105 = vdwg.mxu0
        %v1106 = vld [vmem:[%s405] sm:$0xff]
        %v1107 = vld [vmem:[%s405 + $0x8] sm:$0xff]
        %v1108 = vld [vmem:[%s405 + $0x10] sm:$0xff]
        %v1109 = vld [vmem:[%s405 + $0x18] sm:$0xff]
        %v1110 = vld [vmem:[%s405 + $0x20] sm:$0xff]
        %v1111 = vld [vmem:[%s405 + $0x28] sm:$0xff]
        %v1112 = vld [vmem:[%s405 + $0x30] sm:$0xff]
        %v1113 = vld [vmem:[%s405 + $0x38] sm:$0xff]
        %v1114 = vadd.f32 %v1106, %v1076
        %v1115 = vadd.f32 %v1107, %v1079
        %v1116 = vadd.f32 %v1108, %v1084
        %v1117 = vadd.f32 %v1109, %v1087
        %v1118 = vadd.f32 %v1110, %v1092
        %v1119 = vadd.f32 %v1111, %v1095
        %v1120 = vadd.f32 %v1112, %v1100
        %v1121 = vadd.f32 %v1113, %v1103
        %vm1122 = vcmask 261120
        %1123 = vst.msk [vmem:[%s421] sm:$0xff] %vm1122, %v1114
        %1124 = vst.msk [vmem:[%s421 + $0x8] sm:$0xff] %vm1122, %v1115
        %1125 = vst.msk [vmem:[%s421 + $0x10] sm:$0xff] %vm1122, %v1116
        %1126 = vst.msk [vmem:[%s421 + $0x18] sm:$0xff] %vm1122, %v1117
        %1127 = vst.msk [vmem:[%s421 + $0x20] sm:$0xff] %vm1122, %v1118
        %1128 = vst.msk [vmem:[%s421 + $0x28] sm:$0xff] %vm1122, %v1119
        %1129 = vst.msk [vmem:[%s421 + $0x30] sm:$0xff] %vm1122, %v1120
        %1130 = vst.msk [vmem:[%s421 + $0x38] sm:$0xff] %vm1122, %v1121
        %v1131 = vpack.c.bf16 %v1115, %v1114
        %v1132 = vpack.c.bf16 %v1117, %v1116
        %v1133 = vpack.c.bf16 %v1119, %v1118
        %v1134 = vpack.c.bf16 %v1121, %v1120
        %v1139 = vunpack.c.l.b16 %v1131
        %v1140 = vunpack.c.h.b16 %v1131
        %v1141 = vunpack.c.l.b16 %v1132
        %v1142 = vunpack.c.h.b16 %v1132
        %v1143 = vunpack.c.l.b16 %v1133
        %v1144 = vunpack.c.h.b16 %v1133
        %v1145 = vunpack.c.l.b16 %v1134
        %v1146 = vunpack.c.h.b16 %v1134
        %v1147 = vpack.c.b16 %v1139, %v1139
        %v1148 = vpack.c.b16 %v1140, %v1140
        %v1149 = vpack.c.b16 %v1141, %v1141
        %v1150 = vpack.c.b16 %v1142, %v1142
        %v1151 = vpack.c.b16 %v1143, %v1143
        %v1152 = vpack.c.b16 %v1144, %v1144
        %v1153 = vpack.c.b16 %v1145, %v1145
        %v1154 = vpack.c.b16 %v1146, %v1146
        %vm1163 = vcmask 257024
        %1164 = vst.msk [vmem:[%s429] sm:$0xf] %vm1163, %v1147
        %1165 = vst.msk [vmem:[%s429 + $0x4] sm:$0xf] %vm1163, %v1148
        %1166 = vst.msk [vmem:[%s429 + $0x8] sm:$0xf] %vm1163, %v1149
        %1167 = vst.msk [vmem:[%s429 + $0xc] sm:$0xf] %vm1163, %v1150
        %1168 = vst.msk [vmem:[%s429 + $0x10] sm:$0xf] %vm1163, %v1151
        %1169 = vst.msk [vmem:[%s429 + $0x14] sm:$0xf] %vm1163, %v1152
        %1170 = vst.msk [vmem:[%s429 + $0x18] sm:$0xf] %vm1163, %v1153
        %1171 = vst.msk [vmem:[%s429 + $0x1c] sm:$0xf] %vm1163, %v1154
        %s1172 = sadd.s32 %s26, %s27
        %s1173 = smul.u32 8, %s1172
        %p1174 = scmp.lt.s32.totalorder %s1173, 31
        %s1175 = scalar_select %p1174, %s1173, 31
        %s1176 = smul.addr %s1175, 8
        %s1177 = scalar_lea.vmem %s7, %s1176
        %s1178 = sadd.s32 %s26, %s27
        %s1179 = smul.u32 8, %s1178
        %p1180 = scmp.lt.s32.totalorder %s1179, 31
        %s1181 = scalar_select %p1180, %s1179, 31
        %s1182 = smul.addr %s1181, 4
        %s1183 = scalar_lea.vmem %s8, %s1182
        %s1184 = sadd.s32 %s26, %s27
        %s1185 = smul.u32 8, %s1184
        %p1186 = scmp.lt.s32.totalorder %s1185, 31
        %s1187 = scalar_select %p1186, %s1185, 31
        %s1188 = smul.addr %s1187, 8
        %s1189 = scalar_lea.vmem %s9, %s1188
        // Predicated region
        $region53: #{tpu_custom_call.1} parent=47 // pred_check
          %p1190 = pneg %p215
        $region54: #{tpu_custom_call.1} parent=47 // pred_check_branch
          %1192 = sbr.rel (%p1190) target = $region56
        $region55: #{tpu_custom_call.1} parent=47 // pred_region
          %s1193 = sadd.s32 %s26, %s27
          %s1194 = smul.u32 8, %s1193
        $region56: #{tpu_custom_call.1} parent=47 // pred_fallthru
          _
        // Predicated region
        $region57: #{tpu_custom_call.1} parent=47 // pred_check
          %p1195 = pneg %p243
        $region58: #{tpu_custom_call.1} parent=47 // pred_check_branch
          %1197 = sbr.rel (%p1195) target = $region60
        $region59: #{tpu_custom_call.1} parent=47 // pred_region
          %s1198 = sadd.s32 %s26, %s27
          %s1199 = smul.u32 8, %s1198
        $region60: #{tpu_custom_call.1} parent=47 // pred_fallthru
          _
        // Predicated region
        $region61: #{tpu_custom_call.1} parent=47 // pred_check
          %p1200 = pneg %p271
        $region62: #{tpu_custom_call.1} parent=47 // pred_check_branch
          %1202 = sbr.rel (%p1200) target = $region64
        $region63: #{tpu_custom_call.1} parent=47 // pred_region
          %s1203 = sadd.s32 %s26, %s27
          %s1204 = smul.u32 8, %s1203
        $region64: #{tpu_custom_call.1} parent=47 // pred_fallthru
          _
      $region48: #{tpu_custom_call.1} parent=5 // pred_fallthru
        _
      %p1205 = scmp.le.s32.totalorder 2, %s17
      // Predicated region
      $region65: #{tpu_custom_call.1} parent=5 // pred_check
        %p1206 = pneg %p1205
      $region66: #{tpu_custom_call.1} parent=5 // pred_check_branch
        %1208 = sbr.rel (%p1206) target = $region68
      $region67: #{tpu_custom_call.1} parent=5 // pred_region
        %s1209 = ssub.s32 %s17, 2
        // Predicated region
        $region69: #{tpu_custom_call.1} parent=67 // pred_check
          %p1210 = pneg %p221
        $region70: #{tpu_custom_call.1} parent=67 // pred_check_branch
          %1212 = sbr.rel (%p1210) target = $region72
        $region71: #{tpu_custom_call.1} parent=67 // pred_region
          %s1213 = sadd.s32 %s28, %s29
          %s1214 = smul.u32 8, %s1213
          %p1215 = scmp.lt.s32.totalorder %s1214, 31
          %s1216 = scalar_select %p1215, %s1214, 31
          %s1217 = smul.addr %s1216, 8
          %s1218 = scalar_lea.vmem %s7, %s1217
        $region72: #{tpu_custom_call.1} parent=67 // pred_fallthru
          _
        // Predicated region
        $region73: #{tpu_custom_call.1} parent=67 // pred_check
          %p1219 = pneg %p249
        $region74: #{tpu_custom_call.1} parent=67 // pred_check_branch
          %1221 = sbr.rel (%p1219) target = $region76
        $region75: #{tpu_custom_call.1} parent=67 // pred_region
          %s1222 = sadd.s32 %s28, %s29
          %s1223 = smul.u32 8, %s1222
          %p1224 = scmp.lt.s32.totalorder %s1223, 31
          %s1225 = scalar_select %p1224, %s1223, 31
          %s1226 = smul.addr %s1225, 4
          %s1227 = scalar_lea.vmem %s8, %s1226
        $region76: #{tpu_custom_call.1} parent=67 // pred_fallthru
          _
        // Predicated region
        $region77: #{tpu_custom_call.1} parent=67 // pred_check
          %p1228 = pneg %p277
        $region78: #{tpu_custom_call.1} parent=67 // pred_check_branch
          %1230 = sbr.rel (%p1228) target = $region80
        $region79: #{tpu_custom_call.1} parent=67 // pred_region
          %s1231 = sadd.s32 %s28, %s29
          %s1232 = smul.u32 8, %s1231
          %p1233 = scmp.lt.s32.totalorder %s1232, 31
          %s1234 = scalar_select %p1233, %s1232, 31
          %s1235 = smul.addr %s1234, 8
          %s1236 = scalar_lea.vmem %s9, %s1235
        $region80: #{tpu_custom_call.1} parent=67 // pred_fallthru
          _
      $region68: #{tpu_custom_call.1} parent=5 // pred_fallthru
        _
    $region6: #{tpu_custom_call.1} parent=1 // loop_footer
      %s21 = sadd.s32 1, %s17
    $region7: #{tpu_custom_call.1} parent=1 // loop_footer_branch
      %16 = sbr.rel target = $region3
    $region8: #{tpu_custom_call.1} parent=1 // loop_exit
      _
    %1237 = vsyncpa [#allocation3], 1
    %s1238 = scalar_lea.sflag [#allocation3], 1
    %1239 = vsyncpa %s1238, 1

</llo_original>
